<compile_context>
chip_gen: v7x
topology: tpu7x:2x2x1
jax: 0.10.0
libtpu: 0.0.40
codegen_flags: <defaults>
</compile_context>

<pallas_src>
import functools

import jax
import jax.numpy as jnp
from jax.experimental import pallas as pl
from jax.experimental.pallas import tpu as pltpu

EPS = 1e-5
EXPANSION = 4

# 128-granular tiles map cleanly onto the v5e 4x128^2 MXU and are fine on
# v6e/v7x too (bump to 256 there if desired); total VMEM usage stays well
# below the v7x 64 MiB budget.
TM = 128
TN = 128
TK = 128
LANE = 128
_VMEM_LIMIT = 48 * 1024 * 1024  # conservative: < v7x 64 MiB physical VMEM


# ------------------------------ small helpers ------------------------------ #

def _round_up(x, m):
    return (x + m - 1) // m * m


def _pad2d(a, rows, cols):
    return jnp.pad(a, ((0, rows - a.shape[0]), (0, cols - a.shape[1])))


def _fold_bn(bn, n_pad):
    """Fold BN running stats into per-channel (scale, bias), zero padded."""
    gamma, beta, mean, var = bn
    scale = gamma / jnp.sqrt(var + EPS)
    bias = beta - mean * scale
    scale = jnp.pad(scale, (0, n_pad - scale.shape[0])).reshape(1, n_pad)
    bias = jnp.pad(bias, (0, n_pad - bias.shape[0])).reshape(1, n_pad)
    return scale.astype(jnp.float32), bias.astype(jnp.float32)


# ----------------------------- Pallas kernels ------------------------------ #

def _mm_bn_kernel(x_ref, w_ref, s_ref, b_ref, o_ref, acc_ref, *, relu):
    # Tiled matmul + folded-BN epilogue (conv1).
    k = pl.program_id(2)

    @pl.when(k == 0)
    def _():
        acc_ref[...] = jnp.zeros_like(acc_ref)

    acc_ref[...] += jnp.dot(x_ref[...], w_ref[...],
                            preferred_element_type=jnp.float32)

    @pl.when(k == pl.num_programs(2) - 1)
    def _():
        y = acc_ref[...] * s_ref[...] + b_ref[...]
        if relu:
            y = jnp.maximum(y, 0.0)
        o_ref[...] = y.astype(o_ref.dtype)


def _mm_bn_add_kernel(x_ref, w_ref, s_ref, b_ref, res_ref, o_ref, acc_ref):
    # conv3 + bn3 + fused identity residual + final relu.
    k = pl.program_id(2)

    @pl.when(k == 0)
    def _():
        acc_ref[...] = jnp.zeros_like(acc_ref)

    acc_ref[...] += jnp.dot(x_ref[...], w_ref[...],
                            preferred_element_type=jnp.float32)

    @pl.when(k == pl.num_programs(2) - 1)
    def _():
        y = acc_ref[...] * s_ref[...] + b_ref[...] + res_ref[...].astype(jnp.float32)
        o_ref[...] = jnp.maximum(y, 0.0).astype(o_ref.dtype)


def _mm_bn_proj_kernel(x_ref, w_ref, s_ref, b_ref,
                       xs_ref, wsc_ref, ssc_ref, bsc_ref, o_ref, acc_ref):
    # conv3 + bn3 + fused projection shortcut (1x1 conv + BN) + final relu.
    k = pl.program_id(2)

    @pl.when(k == 0)
    def _():
        acc_ref[...] = jnp.zeros_like(acc_ref)

    acc_ref[...] += jnp.dot(x_ref[...], w_ref[...],
                            preferred_element_type=jnp.float32)

    @pl.when(k == pl.num_programs(2) - 1)
    def _():
        sc = jnp.dot(xs_ref[...], wsc_ref[...],
                     preferred_element_type=jnp.float32)
        sc = sc * ssc_ref[...] + bsc_ref[...]
        y = acc_ref[...] * s_ref[...] + b_ref[...] + sc
        o_ref[...] = jnp.maximum(y, 0.0).astype(o_ref.dtype)


def _conv3x3_bn_kernel(x_ref, w_ref, s_ref, b_ref, o_ref, *, stride, Wo):
    # x_ref: (P, Hq, Wq, C) stride-phase views of ONE padded image, VMEM-resident
    # across every output row (fetched once per image).  For the current output
    # row the 9-tap patch row is assembled on the fly (no im2col in HBM) and fed
    # to a single MXU dot with the (9*C, Cout) weight matrix.
    row = pl.program_id(1)
    C = x_ref.shape[-1]
    cols = []
    for ky in range(3):
        for kx in range(3):
            p = (ky % stride) * stride + (kx % stride)
            oy, ox = ky // stride, kx // stride
            v = x_ref[p, pl.ds(row + oy, 1), pl.ds(ox, Wo), :]   # (1, Wo, C)
            cols.append(v.reshape(Wo, C))
    patch = jnp.concatenate(cols, axis=-1)                        # (Wo, 9*C)
    y = jnp.dot(patch, w_ref[...], preferred_element_type=jnp.float32)
    y = y * s_ref[...] + b_ref[...]
    o_ref[...] = jnp.maximum(y, 0.0).reshape(o_ref.shape).astype(o_ref.dtype)


# ----------------------------- kernel wrappers ------------------------------ #

def _mm_specs():
    x_spec = pl.BlockSpec((TM, TK), lambda i, j, k: (i, k))
    w_spec = pl.BlockSpec((TK, TN), lambda i, j, k: (k, j))
    v_spec = pl.BlockSpec((1, TN), lambda i, j, k: (0, j))
    o_spec = pl.BlockSpec((TM, TN), lambda i, j, k: (i, j))
    return x_spec, w_spec, v_spec, o_spec


def _mm_compiler_params():
    return pltpu.CompilerParams(
        dimension_semantics=("parallel", "parallel", "arbitrary"),
        vmem_limit_bytes=_VMEM_LIMIT)


def matmul_bn(x, w, scale, bias, *, relu, out_dtype):
    M, K = x.shape
    N = w.shape[1]
    x_spec, w_spec, v_spec, o_spec = _mm_specs()
    cost = pl.CostEstimate(
        flops=2 * M * N * K, transcendentals=0,
        bytes_accessed=2 * (x.size + w.size + M * N) + 8 * N)
    return pl.pallas_call(
        functools.partial(_mm_bn_kernel, relu=relu),
        out_shape=jax.ShapeDtypeStruct((M, N), out_dtype),
        grid=(M // TM, N // TN, K // TK),
        in_specs=[x_spec, w_spec, v_spec, v_spec],
        out_specs=o_spec,
        scratch_shapes=[pltpu.VMEM((TM, TN), jnp.float32)],
        compiler_params=_mm_compiler_params(),
        cost_estimate=cost,
    )(x, w, scale, bias)


def matmul_bn_add(x, w, scale, bias, res):
    M, K = x.shape
    N = w.shape[1]
    x_spec, w_spec, v_spec, o_spec = _mm_specs()
    cost = pl.CostEstimate(
        flops=2 * M * N * K, transcendentals=0,
        bytes_accessed=2 * (x.size + w.size + res.size) + 4 * M * N + 8 * N)
    return pl.pallas_call(
        _mm_bn_add_kernel,
        out_shape=jax.ShapeDtypeStruct((M, N), jnp.float32),
        grid=(M // TM, N // TN, K // TK),
        in_specs=[x_spec, w_spec, v_spec, v_spec, o_spec],
        out_specs=o_spec,
        scratch_shapes=[pltpu.VMEM((TM, TN), jnp.float32)],
        compiler_params=_mm_compiler_params(),
        cost_estimate=cost,
    )(x, w, scale, bias, res)


def matmul_bn_proj(x, w, scale, bias, xs, wsc, ssc, bsc):
    M, K = x.shape
    N = w.shape[1]
    Ksc = xs.shape[1]
    x_spec, w_spec, v_spec, o_spec = _mm_specs()
    xs_spec = pl.BlockSpec((TM, Ksc), lambda i, j, k: (i, 0))
    wsc_spec = pl.BlockSpec((Ksc, TN), lambda i, j, k: (0, j))
    cost = pl.CostEstimate(
        flops=2 * M * N * (K + Ksc), transcendentals=0,
        bytes_accessed=2 * (x.size + w.size + xs.size + wsc.size) + 4 * M * N + 16 * N)
    return pl.pallas_call(
        _mm_bn_proj_kernel,
        out_shape=jax.ShapeDtypeStruct((M, N), jnp.float32),
        grid=(M // TM, N // TN, K // TK),
        in_specs=[x_spec, w_spec, v_spec, v_spec, xs_spec, wsc_spec, v_spec, v_spec],
        out_specs=o_spec,
        scratch_shapes=[pltpu.VMEM((TM, TN), jnp.float32)],
        compiler_params=_mm_compiler_params(),
        cost_estimate=cost,
    )(x, w, scale, bias, xs, wsc, ssc, bsc)


def conv3x3_bn_relu(x_nhwc, w2, bn2, stride):
    """3x3 conv (padding=1, stride) + BN + ReLU.

    x_nhwc: (N, H, W, Cp) bf16, channel-padded.  Returns (N, Ho, Wo, Cp) bf16.
    """
    N, H, W, Cp = x_nhwc.shape
    Ho = (H + 2 - 3) // stride + 1
    Wo = (W + 2 - 3) // stride + 1
    e = 2 // stride                      # max tap offset inside a phase
    Hq, Wq = Ho + e, Wo + e
    P = stride * stride

    # Stride-phase split of the padded input (plain XLA; ~1x the input size,
    # unlike a 9x-materialized im2col). For stride=1 this is just the padded image.
    xp = jnp.pad(x_nhwc, ((0, 0), (1, 1), (1, 1), (0, 0)))
    phases = []
    for py in range(stride):
        for px in range(stride):
            t = xp[:, py::stride, px::stride, :][:, :Hq, :Wq, :]
            t = jnp.pad(t, ((0, 0), (0, Hq - t.shape[1]),
                            (0, Wq - t.shape[2]), (0, 0)))
            phases.append(t)
    xph = jnp.stack(phases, axis=1).reshape(N * P, Hq, Wq, Cp).astype(jnp.bfloat16)

    # Weights: (Cout, Cin, 3, 3) -> (ky, kx, cin, cout), zero-pad channels, flatten.
    Cout, Cin = w2.shape[0], w2.shape[1]
    wt = jnp.transpose(w2, (2, 3, 1, 0))                       # (3, 3, Cin, Cout)
    wt = jnp.pad(wt, ((0, 0), (0, 0), (0, Cp - Cin), (0, Cp - Cout)))
    wt = wt.reshape(9 * Cp, Cp).astype(jnp.bfloat16)

    s2, b2 = _fold_bn(bn2, Cp)

    cost = pl.CostEstimate(
        flops=2 * N * Ho * Wo * 9 * Cp * Cp, transcendentals=0,
        bytes_accessed=2 * (xph.size + wt.size + N * Ho * Wo * Cp) + 8 * Cp)
    return pl.pallas_call(
        functools.partial(_conv3x3_bn_kernel, stride=stride, Wo=Wo),
        out_shape=jax.ShapeDtypeStruct((N, Ho, Wo, Cp), jnp.bfloat16),
        grid=(N, Ho),
        in_specs=[
            pl.BlockSpec((P, Hq, Wq, Cp), lambda n, i: (n, 0, 0, 0)),
            pl.BlockSpec((9 * Cp, Cp), lambda n, i: (0, 0)),
            pl.BlockSpec((1, Cp), lambda n, i: (0, 0)),
            pl.BlockSpec((1, Cp), lambda n, i: (0, 0)),
        ],
        out_specs=pl.BlockSpec((1, 1, Wo, Cp), lambda n, i: (n, i, 0, 0)),
        compiler_params=pltpu.CompilerParams(
            dimension_semantics=("parallel", "parallel"),
            vmem_limit_bytes=_VMEM_LIMIT),
        cost_estimate=cost,
    )(xph, wt, s2, b2)


# ------------------------------- forward pass -------------------------------- #

def bottleneck_forward(x_nchw, params, stride):
    x = jnp.transpose(x_nchw, (0, 2, 3, 1)).astype(jnp.float32)   # NCHW -> NHWC
    N, H, W, Cin = x.shape

    w1 = params["conv1_w"]                 # (planes, in_planes, 1, 1)
    planes = w1.shape[0]
    Cout = EXPANSION * planes

    Cin_p = _round_up(Cin, LANE)
    pln_p = _round_up(planes, LANE)
    Co_p = _round_up(Cout, LANE)

    # ---- conv1 (1x1) + bn1 + relu ---------------------------------------- #
    M1 = N * H * W
    M1p = _round_up(M1, TM)
    x2d = _pad2d(x.reshape(M1, Cin), M1p, Cin_p).astype(jnp.bfloat16)
    w1m = _pad2d(w1[:, :, 0, 0].T, Cin_p, pln_p).astype(jnp.bfloat16)
    s1, b1 = _fold_bn(params["bn1"], pln_p)
    out1 = matmul_bn(x2d, w1m, s1, b1, relu=True, out_dtype=jnp.bfloat16)
    out1 = out1[:M1].reshape(N, H, W, pln_p)

    # ---- conv2 (3x3, stride, pad=1) + bn2 + relu -------------------------- #
    out2 = conv3x3_bn_relu(out1, params["conv2_w"], params["bn2"], stride)
    _, Ho, Wo, _ = out2.shape

    # ---- conv3 (1x1) + bn3 + shortcut + relu (single fused kernel) -------- #
    M3 = N * Ho * Wo
    M3p = _round_up(M3, TM)
    x3 = _pad2d(out2.reshape(M3, pln_p), M3p, pln_p)              # already bf16
    w3m = _pad2d(params["conv3_w"][:, :, 0, 0].T, pln_p, Co_p).astype(jnp.bfloat16)
    s3, b3 = _fold_bn(params["bn3"], Co_p)

    if "sc_conv_w" in params:
        xs = x[:, ::stride, ::stride, :].reshape(M3, Cin)          # 1x1 strided conv input
        xs = _pad2d(xs, M3p, Cin_p).astype(jnp.bfloat16)
        wsc = _pad2d(params["sc_conv_w"][:, :, 0, 0].T, Cin_p, Co_p).astype(jnp.bfloat16)
        ssc, bsc = _fold_bn(params["sc_bn"], Co_p)
        out3 = matmul_bn_proj(x3, w3m, s3, b3, xs, wsc, ssc, bsc)
    else:
        # Identity shortcut is only shape-correct when stride==1 and Cin==4*planes.
        assert stride == 1 and Cin == Cout, \
            "identity shortcut requires stride == 1 and in_planes == 4 * planes"
        res = _pad2d(x.reshape(M3, Cin), M3p, Co_p).astype(jnp.bfloat16)
        out3 = matmul_bn_add(x3, w3m, s3, b3, res)

    out = out3[:M3, :Cout].reshape(N, Ho, Wo, Cout)
    return jnp.transpose(out, (0, 3, 1, 2))                        # NHWC -> NCHW


# --------------------------- deterministic params --------------------------- #

def init_params(key, in_planes, planes, stride):
    ks = jax.random.split(key, 8)

    def conv_w(k, shape):
        return jax.random.normal(k, shape, jnp.float32) * 0.1

    def bn_p(k, c):
        k1, k2, k3, k4 = jax.random.split(k, 4)
        gamma = jax.random.uniform(k1, (c,), jnp.float32, 0.5, 1.5)
        beta = jax.random.normal(k2, (c,), jnp.float32) * 0.1
        mean = jax.random.normal(k3, (c,), jnp.float32) * 0.1
        var = jax.random.uniform(k4, (c,), jnp.float32, 0.5, 1.5)
        return (gamma, beta, mean, var)

    params = {
        "conv1_w": conv_w(ks[0], (planes, in_planes, 1, 1)),
        "bn1": bn_p(ks[1], planes),
        "conv2_w": conv_w(ks[2], (planes, planes, 3, 3)),
        "bn2": bn_p(ks[3], planes),
        "conv3_w": conv_w(ks[4], (EXPANSION * planes, planes, 1, 1)),
        "bn3": bn_p(ks[5], EXPANSION * planes),
    }
    if stride != 1 or in_planes != EXPANSION * planes:
        params["sc_conv_w"] = conv_w(ks[6], (EXPANSION * planes, in_planes, 1, 1))
        params["sc_bn"] = bn_p(ks[7], EXPANSION * planes)
    return params


if __name__ == "__main__":
    key = jax.random.PRNGKey(0)
    k_x, k_p = jax.random.split(key)

    batch, in_planes, planes, stride, H = 2, 16, 8, 2, 16
    x = jax.random.normal(k_x, (batch, in_planes, H, H), jnp.float32)  # NCHW
    params = init_params(k_p, in_planes, planes, stride)

    fwd = jax.jit(functools.partial(bottleneck_forward, stride=stride))
    out = fwd(x, params)
    jax.block_until_ready(out)

    assert out.shape == (batch, EXPANSION * planes, H // stride, H // stride)
    print("KERNEL_OK")
</pallas_src>

<mosaic_0001>
module attributes {stable_mosaic.version = 11 : i64} {
  func.func @_mm_bn_kernel(%arg0: i32, %arg1: i32, %arg2: i32, %arg3: memref<128x128xbf16, #tpu.memory_space<vmem>>, %arg4: memref<128x128xbf16, #tpu.memory_space<vmem>>, %arg5: memref<1x128xf32, #tpu.memory_space<vmem>>, %arg6: memref<1x128xf32, #tpu.memory_space<vmem>>, %arg7: memref<128x128xbf16, #tpu.memory_space<vmem>>, %arg8: memref<128x128xf32, #tpu.memory_space<vmem>>) attributes {dimension_semantics = [#tpu.dimension_semantics<parallel>, #tpu.dimension_semantics<parallel>, #tpu.dimension_semantics<arbitrary>], iteration_bounds = array<i64: 4, 1, 1>, scalar_prefetch = 0 : i64, scratch_operands = 1 : i64, tpu.core_type = #tpu.core_type<tc>, window_params = [{transform_indices = @transform_0, window_bounds = array<i64: 128, 128>}, {transform_indices = @transform_1, window_bounds = array<i64: 128, 128>}, {transform_indices = @transform_2, window_bounds = array<i64: 1, 128>}, {transform_indices = @transform_3, window_bounds = array<i64: 1, 128>}, {transform_indices = @transform_4, window_bounds = array<i64: 128, 128>}]} {
    %c0_i32 = arith.constant 0 : i32
    %0 = arith.cmpi eq, %arg2, %c0_i32 : i32
    %1 = arith.extui %0 : i1 to i32
    %c0_i32_0 = arith.constant 0 : i32
    %2 = arith.cmpi ne, %1, %c0_i32_0 : i32
    scf.if %2 {
      %cst_10 = arith.constant 0.000000e+00 : f32
      %12 = vector.broadcast %cst_10 : f32 to vector<128x128xf32>
      %c0_11 = arith.constant 0 : index
      %c0_12 = arith.constant 0 : index
      %13 = vector.load %arg8[%c0_11, %c0_12] : memref<128x128xf32, #tpu.memory_space<vmem>>, vector<128x128xf32>
      tpu.vector_store %arg8[%c0_11, %c0_12], %12 {strides = array<i32>} : memref<128x128xf32, #tpu.memory_space<vmem>>, vector<128x128xf32>,
    } else {
    }
    %c0 = arith.constant 0 : index
    %c0_1 = arith.constant 0 : index
    %3 = vector.load %arg8[%c0, %c0_1] : memref<128x128xf32, #tpu.memory_space<vmem>>, vector<128x128xf32>
    %c0_2 = arith.constant 0 : index
    %c0_3 = arith.constant 0 : index
    %4 = vector.load %arg3[%c0_2, %c0_3] : memref<128x128xbf16, #tpu.memory_space<vmem>>, vector<128x128xbf16>
    %c0_4 = arith.constant 0 : index
    %c0_5 = arith.constant 0 : index
    %5 = vector.load %arg4[%c0_4, %c0_5] : memref<128x128xbf16, #tpu.memory_space<vmem>>, vector<128x128xbf16>
    %cst = arith.constant dense<0.000000e+00> : vector<128x128xf32>
    %6 = tpu.matmul %4, %5, %cst {dimension_numbers = #tpu.dot_dimension_numbers<[1], [0], [0], [1], [0, 0, 1, 1], [], []>} : vector<128x128xbf16>, vector<128x128xbf16>, vector<128x128xf32> -> vector<128x128xf32>
    %7 = arith.addf %3, %6 : vector<128x128xf32>
    %c0_6 = arith.constant 0 : index
    %c0_7 = arith.constant 0 : index
    %8 = vector.load %arg8[%c0_6, %c0_7] : memref<128x128xf32, #tpu.memory_space<vmem>>, vector<128x128xf32>
    tpu.vector_store %arg8[%c0_6, %c0_7], %7 {strides = array<i32>} : memref<128x128xf32, #tpu.memory_space<vmem>>, vector<128x128xf32>,
    %c0_i32_8 = arith.constant 0 : i32
    %9 = arith.cmpi eq, %arg2, %c0_i32_8 : i32
    %10 = arith.extui %9 : i1 to i32
    %c0_i32_9 = arith.constant 0 : i32
    %11 = arith.cmpi ne, %10, %c0_i32_9 : i32
    scf.if %11 {
      %c0_10 = arith.constant 0 : index
      %c0_11 = arith.constant 0 : index
      %12 = vector.load %arg8[%c0_10, %c0_11] : memref<128x128xf32, #tpu.memory_space<vmem>>, vector<128x128xf32>
      %c0_12 = arith.constant 0 : index
      %c0_13 = arith.constant 0 : index
      %13 = vector.load %arg5[%c0_12, %c0_13] : memref<1x128xf32, #tpu.memory_space<vmem>>, vector<1x128xf32>
      %14 = vector.broadcast %13 : vector<1x128xf32> to vector<128x128xf32>
      %15 = arith.mulf %12, %14 : vector<128x128xf32>
      %c0_14 = arith.constant 0 : index
      %c0_15 = arith.constant 0 : index
      %16 = vector.load %arg6[%c0_14, %c0_15] : memref<1x128xf32, #tpu.memory_space<vmem>>, vector<1x128xf32>
      %17 = vector.broadcast %16 : vector<1x128xf32> to vector<128x128xf32>
      %18 = arith.addf %15, %17 : vector<128x128xf32>
      %cst_16 = arith.constant 0.000000e+00 : f32
      %19 = vector.broadcast %cst_16 : f32 to vector<128x128xf32>
      %20 = arith.maximumf %18, %19 : vector<128x128xf32>
      %21 = arith.truncf %20 : vector<128x128xf32> to vector<128x128xbf16>
      %c0_17 = arith.constant 0 : index
      %c0_18 = arith.constant 0 : index
      %22 = vector.load %arg7[%c0_17, %c0_18] : memref<128x128xbf16, #tpu.memory_space<vmem>>, vector<128x128xbf16>
      tpu.vector_store %arg7[%c0_17, %c0_18], %21 {strides = array<i32>} : memref<128x128xbf16, #tpu.memory_space<vmem>>, vector<128x128xbf16>,
    } else {
    }
    return
  }
  func.func @transform_0(%arg0: i32, %arg1: i32, %arg2: i32) -> (i32, i32) {
    %c0_i32 = arith.constant 0 : i32
    return %arg0, %arg2 : i32, i32
  }
  func.func @transform_1(%arg0: i32, %arg1: i32, %arg2: i32) -> (i32, i32) {
    %c0_i32 = arith.constant 0 : i32
    return %arg2, %arg1 : i32, i32
  }
  func.func @transform_2(%arg0: i32, %arg1: i32, %arg2: i32) -> (i32, i32) {
    %c0_i32 = arith.constant 0 : i32
    %c0_i32_0 = arith.constant 0 : i32
    return %c0_i32, %arg1 : i32, i32
  }
  func.func @transform_3(%arg0: i32, %arg1: i32, %arg2: i32) -> (i32, i32) {
    %c0_i32 = arith.constant 0 : i32
    %c0_i32_0 = arith.constant 0 : i32
    return %c0_i32, %arg1 : i32, i32
  }
  func.func @transform_4(%arg0: i32, %arg1: i32, %arg2: i32) -> (i32, i32) {
    %c0_i32 = arith.constant 0 : i32
    return %arg0, %arg1 : i32, i32
  }
}

module attributes {stable_mosaic.version = 11 : i64} {
  func.func @_conv3x3_bn_kernel(%arg0: i32, %arg1: i32, %arg2: memref<4x9x9x128xbf16, #tpu.memory_space<vmem>>, %arg3: memref<1152x128xbf16, #tpu.memory_space<vmem>>, %arg4: memref<1x128xf32, #tpu.memory_space<vmem>>, %arg5: memref<1x128xf32, #tpu.memory_space<vmem>>, %arg6: memref<1x1x8x128xbf16, #tpu.memory_space<vmem>>) attributes {dimension_semantics = [#tpu.dimension_semantics<parallel>, #tpu.dimension_semantics<parallel>], iteration_bounds = array<i64: 2, 8>, scalar_prefetch = 0 : i64, scratch_operands = 0 : i64, tpu.core_type = #tpu.core_type<tc>, window_params = [{transform_indices = @transform_0, window_bounds = array<i64: 4, 9, 9, 128>}, {pipeline_mode = #tpu.pipeline_mode<synchronous>, transform_indices = @transform_1, window_bounds = array<i64: 1152, 128>}, {pipeline_mode = #tpu.pipeline_mode<synchronous>, transform_indices = @transform_2, window_bounds = array<i64: 1, 128>}, {pipeline_mode = #tpu.pipeline_mode<synchronous>, transform_indices = @transform_3, window_bounds = array<i64: 1, 128>}, {transform_indices = @transform_4, window_bounds = array<i64: 1, 1, 8, 128>}]} {
    %c0_i32 = arith.constant 0 : i32
    %0 = arith.addi %arg1, %c0_i32 : i32
    %c0 = arith.constant 0 : index
    %1 = arith.index_cast %0 : i32 to index
    %c0_0 = arith.constant 0 : index
    %c0_1 = arith.constant 0 : index
    %2 = vector.load %arg2[%c0, %1, %c0_0, %c0_1] : memref<4x9x9x128xbf16, #tpu.memory_space<vmem>>, vector<1x1x8x128xbf16>
    %3 = vector.shape_cast %2 : vector<1x1x8x128xbf16> to vector<1x8x128xbf16>
    %4 = vector.shape_cast %3 : vector<1x8x128xbf16> to vector<8x128xbf16>
    %c0_i32_2 = arith.constant 0 : i32
    %5 = arith.addi %arg1, %c0_i32_2 : i32
    %c1 = arith.constant 1 : index
    %6 = arith.index_cast %5 : i32 to index
    %c0_3 = arith.constant 0 : index
    %c0_4 = arith.constant 0 : index
    %7 = vector.load %arg2[%c1, %6, %c0_3, %c0_4] : memref<4x9x9x128xbf16, #tpu.memory_space<vmem>>, vector<1x1x8x128xbf16>
    %8 = vector.shape_cast %7 : vector<1x1x8x128xbf16> to vector<1x8x128xbf16>
    %9 = vector.shape_cast %8 : vector<1x8x128xbf16> to vector<8x128xbf16>
    %c0_i32_5 = arith.constant 0 : i32
    %10 = arith.addi %arg1, %c0_i32_5 : i32
    %c0_6 = arith.constant 0 : index
    %11 = arith.index_cast %10 : i32 to index
    %c1_7 = arith.constant 1 : index
    %c0_8 = arith.constant 0 : index
    %12 = vector.load %arg2[%c0_6, %11, %c1_7, %c0_8] : memref<4x9x9x128xbf16, #tpu.memory_space<vmem>>, vector<1x1x8x128xbf16>
    %13 = vector.shape_cast %12 : vector<1x1x8x128xbf16> to vector<1x8x128xbf16>
    %14 = vector.shape_cast %13 : vector<1x8x128xbf16> to vector<8x128xbf16>
    %c0_i32_9 = arith.constant 0 : i32
    %15 = arith.addi %arg1, %c0_i32_9 : i32
    %c2 = arith.constant 2 : index
    %16 = arith.index_cast %15 : i32 to index
    %c0_10 = arith.constant 0 : index
    %c0_11 = arith.constant 0 : index
    %17 = vector.load %arg2[%c2, %16, %c0_10, %c0_11] : memref<4x9x9x128xbf16, #tpu.memory_space<vmem>>, vector<1x1x8x128xbf16>
    %18 = vector.shape_cast %17 : vector<1x1x8x128xbf16> to vector<1x8x128xbf16>
    %19 = vector.shape_cast %18 : vector<1x8x128xbf16> to vector<8x128xbf16>
    %c0_i32_12 = arith.constant 0 : i32
    %20 = arith.addi %arg1, %c0_i32_12 : i32
    %c3 = arith.constant 3 : index
    %21 = arith.index_cast %20 : i32 to index
    %c0_13 = arith.constant 0 : index
    %c0_14 = arith.constant 0 : index
    %22 = vector.load %arg2[%c3, %21, %c0_13, %c0_14] : memref<4x9x9x128xbf16, #tpu.memory_space<vmem>>, vector<1x1x8x128xbf16>
    %23 = vector.shape_cast %22 : vector<1x1x8x128xbf16> to vector<1x8x128xbf16>
    %24 = vector.shape_cast %23 : vector<1x8x128xbf16> to vector<8x128xbf16>
    %c0_i32_15 = arith.constant 0 : i32
    %25 = arith.addi %arg1, %c0_i32_15 : i32
    %c2_16 = arith.constant 2 : index
    %26 = arith.index_cast %25 : i32 to index
    %c1_17 = arith.constant 1 : index
    %c0_18 = arith.constant 0 : index
    %27 = vector.load %arg2[%c2_16, %26, %c1_17, %c0_18] : memref<4x9x9x128xbf16, #tpu.memory_space<vmem>>, vector<1x1x8x128xbf16>
    %28 = vector.shape_cast %27 : vector<1x1x8x128xbf16> to vector<1x8x128xbf16>
    %29 = vector.shape_cast %28 : vector<1x8x128xbf16> to vector<8x128xbf16>
    %c1_i32 = arith.constant 1 : i32
    %30 = arith.addi %arg1, %c1_i32 : i32
    %c0_19 = arith.constant 0 : index
    %31 = arith.index_cast %30 : i32 to index
    %c0_20 = arith.constant 0 : index
    %c0_21 = arith.constant 0 : index
    %32 = vector.load %arg2[%c0_19, %31, %c0_20, %c0_21] : memref<4x9x9x128xbf16, #tpu.memory_space<vmem>>, vector<1x1x8x128xbf16>
    %33 = vector.shape_cast %32 : vector<1x1x8x128xbf16> to vector<1x8x128xbf16>
    %34 = vector.shape_cast %33 : vector<1x8x128xbf16> to vector<8x128xbf16>
    %c1_i32_22 = arith.constant 1 : i32
    %35 = arith.addi %arg1, %c1_i32_22 : i32
    %c1_23 = arith.constant 1 : index
    %36 = arith.index_cast %35 : i32 to index
    %c0_24 = arith.constant 0 : index
    %c0_25 = arith.constant 0 : index
    %37 = vector.load %arg2[%c1_23, %36, %c0_24, %c0_25] : memref<4x9x9x128xbf16, #tpu.memory_space<vmem>>, vector<1x1x8x128xbf16>
    %38 = vector.shape_cast %37 : vector<1x1x8x128xbf16> to vector<1x8x128xbf16>
    %39 = vector.shape_cast %38 : vector<1x8x128xbf16> to vector<8x128xbf16>
    %c1_i32_26 = arith.constant 1 : i32
    %40 = arith.addi %arg1, %c1_i32_26 : i32
    %c0_27 = arith.constant 0 : index
    %41 = arith.index_cast %40 : i32 to index
    %c1_28 = arith.constant 1 : index
    %c0_29 = arith.constant 0 : index
    %42 = vector.load %arg2[%c0_27, %41, %c1_28, %c0_29] : memref<4x9x9x128xbf16, #tpu.memory_space<vmem>>, vector<1x1x8x128xbf16>
    %43 = vector.shape_cast %42 : vector<1x1x8x128xbf16> to vector<1x8x128xbf16>
    %44 = vector.shape_cast %43 : vector<1x8x128xbf16> to vector<8x128xbf16>
    %45 = tpu.concatenate %4, %9, %14, %19, %24, %29, %34, %39, %44 in 1 : vector<8x128xbf16>, vector<8x128xbf16>, vector<8x128xbf16>, vector<8x128xbf16>, vector<8x128xbf16>, vector<8x128xbf16>, vector<8x128xbf16>, vector<8x128xbf16>, vector<8x128xbf16> -> vector<8x1152xbf16>
    %c0_30 = arith.constant 0 : index
    %c0_31 = arith.constant 0 : index
    %46 = vector.load %arg3[%c0_30, %c0_31] : memref<1152x128xbf16, #tpu.memory_space<vmem>>, vector<1152x128xbf16>
    %cst = arith.constant dense<0.000000e+00> : vector<8x128xf32>
    %47 = tpu.matmul %45, %46, %cst {dimension_numbers = #tpu.dot_dimension_numbers<[1], [0], [0], [1], [0, 0, 1, 1], [], []>} : vector<8x1152xbf16>, vector<1152x128xbf16>, vector<8x128xf32> -> vector<8x128xf32>
    %c0_32 = arith.constant 0 : index
    %c0_33 = arith.constant 0 : index
    %48 = vector.load %arg4[%c0_32, %c0_33] : memref<1x128xf32, #tpu.memory_space<vmem>>, vector<1x128xf32>
    %49 = vector.broadcast %48 : vector<1x128xf32> to vector<8x128xf32>
    %50 = arith.mulf %47, %49 : vector<8x128xf32>
    %c0_34 = arith.constant 0 : index
    %c0_35 = arith.constant 0 : index
    %51 = vector.load %arg5[%c0_34, %c0_35] : memref<1x128xf32, #tpu.memory_space<vmem>>, vector<1x128xf32>
    %52 = vector.broadcast %51 : vector<1x128xf32> to vector<8x128xf32>
    %53 = arith.addf %50, %52 : vector<8x128xf32>
    %cst_36 = arith.constant 0.000000e+00 : f32
    %54 = vector.broadcast %cst_36 : f32 to vector<8x128xf32>
    %55 = arith.maximumf %53, %54 : vector<8x128xf32>
    %56 = vector.shape_cast %55 : vector<8x128xf32> to vector<1x1x8x128xf32>
    %57 = arith.truncf %56 : vector<1x1x8x128xf32> to vector<1x1x8x128xbf16>
    %c0_37 = arith.constant 0 : index
    %c0_38 = arith.constant 0 : index
    %c0_39 = arith.constant 0 : index
    %c0_40 = arith.constant 0 : index
    %58 = vector.load %arg6[%c0_37, %c0_38, %c0_39, %c0_40] : memref<1x1x8x128xbf16, #tpu.memory_space<vmem>>, vector<1x1x8x128xbf16>
    tpu.vector_store %arg6[%c0_37, %c0_38, %c0_39, %c0_40], %57 {strides = array<i32>} : memref<1x1x8x128xbf16, #tpu.memory_space<vmem>>, vector<1x1x8x128xbf16>,
    return
  }
  func.func @transform_0(%arg0: i32, %arg1: i32) -> (i32, i32, i32, i32) {
    %c0_i32 = arith.constant 0 : i32
    %c0_i32_0 = arith.constant 0 : i32
    %c0_i32_1 = arith.constant 0 : i32
    %c0_i32_2 = arith.constant 0 : i32
    return %arg0, %c0_i32, %c0_i32_0, %c0_i32_1 : i32, i32, i32, i32
  }
  func.func @transform_1(%arg0: i32, %arg1: i32) -> (i32, i32) {
    %c0_i32 = arith.constant 0 : i32
    %c0_i32_0 = arith.constant 0 : i32
    %c0_i32_1 = arith.constant 0 : i32
    return %c0_i32, %c0_i32_0 : i32, i32
  }
  func.func @transform_2(%arg0: i32, %arg1: i32) -> (i32, i32) {
    %c0_i32 = arith.constant 0 : i32
    %c0_i32_0 = arith.constant 0 : i32
    %c0_i32_1 = arith.constant 0 : i32
    return %c0_i32, %c0_i32_0 : i32, i32
  }
  func.func @transform_3(%arg0: i32, %arg1: i32) -> (i32, i32) {
    %c0_i32 = arith.constant 0 : i32
    %c0_i32_0 = arith.constant 0 : i32
    %c0_i32_1 = arith.constant 0 : i32
    return %c0_i32, %c0_i32_0 : i32, i32
  }
  func.func @transform_4(%arg0: i32, %arg1: i32) -> (i32, i32, i32, i32) {
    %c0_i32 = arith.constant 0 : i32
    %c0_i32_0 = arith.constant 0 : i32
    %c0_i32_1 = arith.constant 0 : i32
    return %arg0, %arg1, %c0_i32, %c0_i32_0 : i32, i32, i32, i32
  }
}

module attributes {stable_mosaic.version = 11 : i64} {
  func.func @_mm_bn_proj_kernel(%arg0: i32, %arg1: i32, %arg2: i32, %arg3: memref<128x128xbf16, #tpu.memory_space<vmem>>, %arg4: memref<128x128xbf16, #tpu.memory_space<vmem>>, %arg5: memref<1x128xf32, #tpu.memory_space<vmem>>, %arg6: memref<1x128xf32, #tpu.memory_space<vmem>>, %arg7: memref<128x128xbf16, #tpu.memory_space<vmem>>, %arg8: memref<128x128xbf16, #tpu.memory_space<vmem>>, %arg9: memref<1x128xf32, #tpu.memory_space<vmem>>, %arg10: memref<1x128xf32, #tpu.memory_space<vmem>>, %arg11: memref<128x128xf32, #tpu.memory_space<vmem>>, %arg12: memref<128x128xf32, #tpu.memory_space<vmem>>) attributes {dimension_semantics = [#tpu.dimension_semantics<parallel>, #tpu.dimension_semantics<parallel>, #tpu.dimension_semantics<arbitrary>], iteration_bounds = array<i64: 1, 1, 1>, scalar_prefetch = 0 : i64, scratch_operands = 1 : i64, tpu.core_type = #tpu.core_type<tc>, window_params = [{transform_indices = @transform_0, window_bounds = array<i64: 128, 128>}, {transform_indices = @transform_1, window_bounds = array<i64: 128, 128>}, {transform_indices = @transform_2, window_bounds = array<i64: 1, 128>}, {transform_indices = @transform_3, window_bounds = array<i64: 1, 128>}, {transform_indices = @transform_4, window_bounds = array<i64: 128, 128>}, {transform_indices = @transform_5, window_bounds = array<i64: 128, 128>}, {transform_indices = @transform_6, window_bounds = array<i64: 1, 128>}, {transform_indices = @transform_7, window_bounds = array<i64: 1, 128>}, {transform_indices = @transform_8, window_bounds = array<i64: 128, 128>}]} {
    %c0_i32 = arith.constant 0 : i32
    %0 = arith.cmpi eq, %arg2, %c0_i32 : i32
    %1 = arith.extui %0 : i1 to i32
    %c0_i32_0 = arith.constant 0 : i32
    %2 = arith.cmpi ne, %1, %c0_i32_0 : i32
    scf.if %2 {
      %cst_10 = arith.constant 0.000000e+00 : f32
      %12 = vector.broadcast %cst_10 : f32 to vector<128x128xf32>
      %c0_11 = arith.constant 0 : index
      %c0_12 = arith.constant 0 : index
      %13 = vector.load %arg12[%c0_11, %c0_12] : memref<128x128xf32, #tpu.memory_space<vmem>>, vector<128x128xf32>
      tpu.vector_store %arg12[%c0_11, %c0_12], %12 {strides = array<i32>} : memref<128x128xf32, #tpu.memory_space<vmem>>, vector<128x128xf32>,
    } else {
    }
    %c0 = arith.constant 0 : index
    %c0_1 = arith.constant 0 : index
    %3 = vector.load %arg12[%c0, %c0_1] : memref<128x128xf32, #tpu.memory_space<vmem>>, vector<128x128xf32>
    %c0_2 = arith.constant 0 : index
    %c0_3 = arith.constant 0 : index
    %4 = vector.load %arg3[%c0_2, %c0_3] : memref<128x128xbf16, #tpu.memory_space<vmem>>, vector<128x128xbf16>
    %c0_4 = arith.constant 0 : index
    %c0_5 = arith.constant 0 : index
    %5 = vector.load %arg4[%c0_4, %c0_5] : memref<128x128xbf16, #tpu.memory_space<vmem>>, vector<128x128xbf16>
    %cst = arith.constant dense<0.000000e+00> : vector<128x128xf32>
    %6 = tpu.matmul %4, %5, %cst {dimension_numbers = #tpu.dot_dimension_numbers<[1], [0], [0], [1], [0, 0, 1, 1], [], []>} : vector<128x128xbf16>, vector<128x128xbf16>, vector<128x128xf32> -> vector<128x128xf32>
    %7 = arith.addf %3, %6 : vector<128x128xf32>
    %c0_6 = arith.constant 0 : index
    %c0_7 = arith.constant 0 : index
    %8 = vector.load %arg12[%c0_6, %c0_7] : memref<128x128xf32, #tpu.memory_space<vmem>>, vector<128x128xf32>
    tpu.vector_store %arg12[%c0_6, %c0_7], %7 {strides = array<i32>} : memref<128x128xf32, #tpu.memory_space<vmem>>, vector<128x128xf32>,
    %c0_i32_8 = arith.constant 0 : i32
    %9 = arith.cmpi eq, %arg2, %c0_i32_8 : i32
    %10 = arith.extui %9 : i1 to i32
    %c0_i32_9 = arith.constant 0 : i32
    %11 = arith.cmpi ne, %10, %c0_i32_9 : i32
    scf.if %11 {
      %c0_10 = arith.constant 0 : index
      %c0_11 = arith.constant 0 : index
      %12 = vector.load %arg7[%c0_10, %c0_11] : memref<128x128xbf16, #tpu.memory_space<vmem>>, vector<128x128xbf16>
      %c0_12 = arith.constant 0 : index
      %c0_13 = arith.constant 0 : index
      %13 = vector.load %arg8[%c0_12, %c0_13] : memref<128x128xbf16, #tpu.memory_space<vmem>>, vector<128x128xbf16>
      %cst_14 = arith.constant dense<0.000000e+00> : vector<128x128xf32>
      %14 = tpu.matmul %12, %13, %cst_14 {dimension_numbers = #tpu.dot_dimension_numbers<[1], [0], [0], [1], [0, 0, 1, 1], [], []>} : vector<128x128xbf16>, vector<128x128xbf16>, vector<128x128xf32> -> vector<128x128xf32>
      %c0_15 = arith.constant 0 : index
      %c0_16 = arith.constant 0 : index
      %15 = vector.load %arg9[%c0_15, %c0_16] : memref<1x128xf32, #tpu.memory_space<vmem>>, vector<1x128xf32>
      %16 = vector.broadcast %15 : vector<1x128xf32> to vector<128x128xf32>
      %17 = arith.mulf %14, %16 : vector<128x128xf32>
      %c0_17 = arith.constant 0 : index
      %c0_18 = arith.constant 0 : index
      %18 = vector.load %arg10[%c0_17, %c0_18] : memref<1x128xf32, #tpu.memory_space<vmem>>, vector<1x128xf32>
      %19 = vector.broadcast %18 : vector<1x128xf32> to vector<128x128xf32>
      %20 = arith.addf %17, %19 : vector<128x128xf32>
      %c0_19 = arith.constant 0 : index
      %c0_20 = arith.constant 0 : index
      %21 = vector.load %arg12[%c0_19, %c0_20] : memref<128x128xf32, #tpu.memory_space<vmem>>, vector<128x128xf32>
      %c0_21 = arith.constant 0 : index
      %c0_22 = arith.constant 0 : index
      %22 = vector.load %arg5[%c0_21, %c0_22] : memref<1x128xf32, #tpu.memory_space<vmem>>, vector<1x128xf32>
      %23 = vector.broadcast %22 : vector<1x128xf32> to vector<128x128xf32>
      %24 = arith.mulf %21, %23 : vector<128x128xf32>
      %c0_23 = arith.constant 0 : index
      %c0_24 = arith.constant 0 : index
      %25 = vector.load %arg6[%c0_23, %c0_24] : memref<1x128xf32, #tpu.memory_space<vmem>>, vector<1x128xf32>
      %26 = vector.broadcast %25 : vector<1x128xf32> to vector<128x128xf32>
      %27 = arith.addf %24, %26 : vector<128x128xf32>
      %28 = arith.addf %27, %20 : vector<128x128xf32>
      %cst_25 = arith.constant 0.000000e+00 : f32
      %29 = vector.broadcast %cst_25 : f32 to vector<128x128xf32>
      %30 = arith.maximumf %28, %29 : vector<128x128xf32>
      %c0_26 = arith.constant 0 : index
      %c0_27 = arith.constant 0 : index
      %31 = vector.load %arg11[%c0_26, %c0_27] : memref<128x128xf32, #tpu.memory_space<vmem>>, vector<128x128xf32>
      tpu.vector_store %arg11[%c0_26, %c0_27], %30 {strides = array<i32>} : memref<128x128xf32, #tpu.memory_space<vmem>>, vector<128x128xf32>,
    } else {
    }
    return
  }
  func.func @transform_0(%arg0: i32, %arg1: i32, %arg2: i32) -> (i32, i32) {
    %c0_i32 = arith.constant 0 : i32
    return %arg0, %arg2 : i32, i32
  }
  func.func @transform_1(%arg0: i32, %arg1: i32, %arg2: i32) -> (i32, i32) {
    %c0_i32 = arith.constant 0 : i32
    return %arg2, %arg1 : i32, i32
  }
  func.func @transform_2(%arg0: i32, %arg1: i32, %arg2: i32) -> (i32, i32) {
    %c0_i32 = arith.constant 0 : i32
    %c0_i32_0 = arith.constant 0 : i32
    return %c0_i32, %arg1 : i32, i32
  }
  func.func @transform_3(%arg0: i32, %arg1: i32, %arg2: i32) -> (i32, i32) {
    %c0_i32 = arith.constant 0 : i32
    %c0_i32_0 = arith.constant 0 : i32
    return %c0_i32, %arg1 : i32, i32
  }
  func.func @transform_4(%arg0: i32, %arg1: i32, %arg2: i32) -> (i32, i32) {
    %c0_i32 = arith.constant 0 : i32
    %c0_i32_0 = arith.constant 0 : i32
    return %arg0, %c0_i32 : i32, i32
  }
  func.func @transform_5(%arg0: i32, %arg1: i32, %arg2: i32) -> (i32, i32) {
    %c0_i32 = arith.constant 0 : i32
    %c0_i32_0 = arith.constant 0 : i32
    return %c0_i32, %arg1 : i32, i32
  }
  func.func @transform_6(%arg0: i32, %arg1: i32, %arg2: i32) -> (i32, i32) {
    %c0_i32 = arith.constant 0 : i32
    %c0_i32_0 = arith.constant 0 : i32
    return %c0_i32, %arg1 : i32, i32
  }
  func.func @transform_7(%arg0: i32, %arg1: i32, %arg2: i32) -> (i32, i32) {
    %c0_i32 = arith.constant 0 : i32
    %c0_i32_0 = arith.constant 0 : i32
    return %c0_i32, %arg1 : i32, i32
  }
  func.func @transform_8(%arg0: i32, %arg1: i32, %arg2: i32) -> (i32, i32) {
    %c0_i32 = arith.constant 0 : i32
    return %arg0, %arg1 : i32, i32
  }
}

</mosaic_0001>

<llo_original>
// kernel: bottleneck_forward.3
$region0: #{bottleneck_forward.3}
  #allocation0 [shape = 'u32[]', space=smem, size = 0x4, offset = 0x4, fixed_abs, tag = 'smem constant byte address 0x4 - core index']
  #allocation1 [shape = 'u32[144,128]{1,0:T(1,128)}', space=vmem, size = 0x12000, scoped, tag = 'internal scratch']
  #allocation2 [shape = 'f32[128,128]{1,0:T(8,128)}', space=vmem, size = 0x10000, scoped, tag = 'scratch operand']
  %s0 = inlined_call_operand.vmem [shape: bf16[512,128], index: 0, kind: input, shape index: {}]
  %s1 = inlined_call_operand.vmem [shape: bf16[128,128], index: 1, kind: input, shape index: {}]
  %s2 = inlined_call_operand.vmem [shape: f32[1,128], index: 2, kind: input, shape index: {}]
  %s3 = inlined_call_operand.vmem [shape: f32[1,128], index: 3, kind: input, shape index: {}]
  %s4 = inlined_call_operand.vmem [shape: bf16[512,128], index: 4, kind: output, shape index: {}]
  %s5 = sld [smem:[#allocation0]]
  $region57: #{bottleneck_forward.3} parent=0
    _
  %s7 = ssub.s32 1, %s5
  %s8 = scalar_select 0, %s7, %s5
  loop: start=0, step=1, limit=6
  $region2: #{bottleneck_forward.3} parent=0 // loop_pre_header
    _
  $region3: #{bottleneck_forward.3} parent=0 // loop_header
    %s10 = sphi 0, %s14
    %p11 = scmp.ge.s32.totalorder %s10, 6
    %s17 = sphi 0, %s36
    %s18 = sphi 0, %s32
    %s19 = sphi 0, %s28
    %s20 = sphi 0, %s17
    %s21 = sphi 0, %s18
    %s22 = sphi 0, %s19
    %s23 = sphi 0, %s20
    %s24 = sphi 0, %s21
    %s25 = sphi 0, %s22
    %s41 = sphi 0, %s43
    %s44 = sphi 0, %s41
    %s45 = sphi 0, %s44
    %s61 = sphi 0, %s45
    %s69 = sphi 0, %s71
    %s72 = sphi 0, %s69
    %s73 = sphi 0, %s72
    %s89 = sphi 0, %s73
    %s95 = sphi 0, %s97
    %s98 = sphi 0, %s95
    %s99 = sphi 0, %s98
    %s115 = sphi 0, %s99
    %s121 = sphi 0, %s123
    %s124 = sphi 0, %s121
    %s125 = sphi 0, %s124
    %s141 = sphi 0, %s125
    %s149 = sphi 0, %s151
    %s152 = sphi 0, %s149
    %s153 = sphi 0, %s152
    %s169 = sphi 0, %s153
  $region4: #{bottleneck_forward.3} parent=0 // loop_header_branch
    %13 = sbr.rel (%p11) target = $region8
  $region5: #{bottleneck_forward.3} parent=0 // loop_body
    %s15 = ssub.s32 %s10, 1
    %s16 = ssub.s32 %s10, 2
    %s26 = sadd.s32 1, %s19
    %p27 = scmp.ge.s32.totalorder %s26, 1
    %s28 = scalar_select %p27, 0, %s26
    %s29 = sadd.s32 1, %s18
    %s30 = scalar_select %p27, %s29, %s18
    %p31 = scmp.ge.s32.totalorder %s30, 1
    %s32 = scalar_select %p31, 0, %s30
    %s33 = sadd.s32 1, %s17
    %s34 = scalar_select %p31, %s33, %s17
    %p35 = scmp.ge.s32.totalorder %s34, 4
    %s36 = scalar_select %p35, 0, %s34
    %s37 = ssub.s32 %s17, %s36
    %s38 = ssub.s32 %s19, %s28
    %s39 = sor.u32 %s37, %s38
    %p40 = scmp.eq.s32.totalorder %s39, 0
    %s42 = sadd.s32 %s41, 1
    %s43 = scalar_select %p40, %s41, %s42
    %p46 = pneg %p40
    %p47 = scmp.eq.s32.totalorder %s10, 3
    %p48 = por %p46, %p47
    %p49 = scmp.ne.s32.totalorder %s41, %s44
    %p50 = scmp.eq.s32.totalorder %s10, 0
    %p51 = por %p49, %p50
    %p52 = scmp.ne.s32.totalorder %s41, %s44
    %p53 = scmp.eq.s32.totalorder %s15, 3
    %p54 = por %p52, %p53
    %p55 = scmp.ne.s32.totalorder %s44, %s45
    %p56 = scmp.eq.s32.totalorder %s15, 0
    %p57 = por %p55, %p56
    %p58 = scmp.ne.s32.totalorder %s44, %s45
    %p59 = scmp.eq.s32.totalorder %s16, 3
    %p60 = por %p58, %p59
    %p62 = scmp.ne.s32.totalorder %s45, %s61
    %p63 = scmp.eq.s32.totalorder %s16, 0
    %p64 = por %p62, %p63
    %s65 = ssub.s32 %s19, %s28
    %s66 = ssub.s32 %s18, %s32
    %s67 = sor.u32 %s65, %s66
    %p68 = scmp.eq.s32.totalorder %s67, 0
    %s70 = sadd.s32 %s69, 1
    %s71 = scalar_select %p68, %s69, %s70
    %p74 = pneg %p68
    %p75 = scmp.eq.s32.totalorder %s10, 3
    %p76 = por %p74, %p75
    %p77 = scmp.ne.s32.totalorder %s69, %s72
    %p78 = scmp.eq.s32.totalorder %s10, 0
    %p79 = por %p77, %p78
    %p80 = scmp.ne.s32.totalorder %s69, %s72
    %p81 = scmp.eq.s32.totalorder %s15, 3
    %p82 = por %p80, %p81
    %p83 = scmp.ne.s32.totalorder %s72, %s73
    %p84 = scmp.eq.s32.totalorder %s15, 0
    %p85 = por %p83, %p84
    %p86 = scmp.ne.s32.totalorder %s72, %s73
    %p87 = scmp.eq.s32.totalorder %s16, 3
    %p88 = por %p86, %p87
    %p90 = scmp.ne.s32.totalorder %s73, %s89
    %p91 = scmp.eq.s32.totalorder %s16, 0
    %p92 = por %p90, %p91
    %s93 = ssub.s32 %s18, %s32
    %p94 = scmp.eq.s32.totalorder %s93, 0
    %s96 = sadd.s32 %s95, 1
    %s97 = scalar_select %p94, %s95, %s96
    %p100 = pneg %p94
    %p101 = scmp.eq.s32.totalorder %s10, 3
    %p102 = por %p100, %p101
    %p103 = scmp.ne.s32.totalorder %s95, %s98
    %p104 = scmp.eq.s32.totalorder %s10, 0
    %p105 = por %p103, %p104
    %p106 = scmp.ne.s32.totalorder %s95, %s98
    %p107 = scmp.eq.s32.totalorder %s15, 3
    %p108 = por %p106, %p107
    %p109 = scmp.ne.s32.totalorder %s98, %s99
    %p110 = scmp.eq.s32.totalorder %s15, 0
    %p111 = por %p109, %p110
    %p112 = scmp.ne.s32.totalorder %s98, %s99
    %p113 = scmp.eq.s32.totalorder %s16, 3
    %p114 = por %p112, %p113
    %p116 = scmp.ne.s32.totalorder %s99, %s115
    %p117 = scmp.eq.s32.totalorder %s16, 0
    %p118 = por %p116, %p117
    %s119 = ssub.s32 %s18, %s32
    %p120 = scmp.eq.s32.totalorder %s119, 0
    %s122 = sadd.s32 %s121, 1
    %s123 = scalar_select %p120, %s121, %s122
    %p126 = pneg %p120
    %p127 = scmp.eq.s32.totalorder %s10, 3
    %p128 = por %p126, %p127
    %p129 = scmp.ne.s32.totalorder %s121, %s124
    %p130 = scmp.eq.s32.totalorder %s10, 0
    %p131 = por %p129, %p130
    %p132 = scmp.ne.s32.totalorder %s121, %s124
    %p133 = scmp.eq.s32.totalorder %s15, 3
    %p134 = por %p132, %p133
    %p135 = scmp.ne.s32.totalorder %s124, %s125
    %p136 = scmp.eq.s32.totalorder %s15, 0
    %p137 = por %p135, %p136
    %p138 = scmp.ne.s32.totalorder %s124, %s125
    %p139 = scmp.eq.s32.totalorder %s16, 3
    %p140 = por %p138, %p139
    %p142 = scmp.ne.s32.totalorder %s125, %s141
    %p143 = scmp.eq.s32.totalorder %s16, 0
    %p144 = por %p142, %p143
    %s145 = ssub.s32 %s17, %s36
    %s146 = ssub.s32 %s18, %s32
    %s147 = sor.u32 %s145, %s146
    %p148 = scmp.eq.s32.totalorder %s147, 0
    %s150 = sadd.s32 %s149, 1
    %s151 = scalar_select %p148, %s149, %s150
    %p154 = pneg %p148
    %p155 = scmp.eq.s32.totalorder %s10, 3
    %p156 = por %p154, %p155
    %p157 = scmp.ne.s32.totalorder %s149, %s152
    %p158 = scmp.eq.s32.totalorder %s10, 0
    %p159 = por %p157, %p158
    %p160 = scmp.ne.s32.totalorder %s149, %s152
    %p161 = scmp.eq.s32.totalorder %s15, 3
    %p162 = por %p160, %p161
    %p163 = scmp.ne.s32.totalorder %s152, %s153
    %p164 = scmp.eq.s32.totalorder %s15, 0
    %p165 = por %p163, %p164
    %p166 = scmp.ne.s32.totalorder %s152, %s153
    %p167 = scmp.eq.s32.totalorder %s16, 3
    %p168 = por %p166, %p167
    %p170 = scmp.ne.s32.totalorder %s153, %s169
    %p171 = scmp.eq.s32.totalorder %s16, 0
    %p172 = por %p170, %p171
    %p173 = scmp.le.s32.totalorder 1, %s10
    %p174 = scmp.lt.s32.totalorder %s10, 5
    %p175 = pnand %p173, %p174
    %p176 = pneg %p175
    // Predicated region
    $region9: #{bottleneck_forward.3} parent=5 // pred_check
      _
    $region10: #{bottleneck_forward.3} parent=5 // pred_check_branch
      %178 = sbr.rel (%p175) target = $region12
    $region11: #{bottleneck_forward.3} parent=5 // pred_region
      %s179 = ssub.s32 %s10, 1
      // Predicated region
      $region13: #{bottleneck_forward.3} parent=11 // pred_check
        %p180 = pneg %p85
      $region14: #{bottleneck_forward.3} parent=11 // pred_check_branch
        %182 = sbr.rel (%p180) target = $region16
      $region15: #{bottleneck_forward.3} parent=11 // pred_region
        %s183 = smul.u32 16, %s22
        %p184 = scmp.lt.s32.totalorder %s183, 15
        %s185 = scalar_select %p184, %s183, 15
        %p186 = scmp.lt.s32.totalorder %s21, 0
        %s187 = scalar_select %p186, %s21, 0
        %s188 = sadd.s32 %s187, %s185
        %s189 = smul.addr %s188, 4
        %s190 = scalar_lea.vmem %s1, %s189
        %s191 = smul.u32 16, %s22
      $region16: #{bottleneck_forward.3} parent=11 // pred_fallthru
        _
      // Predicated region
      $region17: #{bottleneck_forward.3} parent=11 // pred_check
        %p192 = pneg %p111
      $region18: #{bottleneck_forward.3} parent=11 // pred_check_branch
        %194 = sbr.rel (%p192) target = $region20
      $region19: #{bottleneck_forward.3} parent=11 // pred_region
        %p195 = scmp.lt.s32.totalorder %s21, 0
        %s196 = scalar_select %p195, %s21, 0
        %s197 = scalar_lea.vmem %s2, %s196
      $region20: #{bottleneck_forward.3} parent=11 // pred_fallthru
        _
      // Predicated region
      $region21: #{bottleneck_forward.3} parent=11 // pred_check
        %p198 = pneg %p137
      $region22: #{bottleneck_forward.3} parent=11 // pred_check_branch
        %200 = sbr.rel (%p198) target = $region24
      $region23: #{bottleneck_forward.3} parent=11 // pred_region
        %p201 = scmp.lt.s32.totalorder %s21, 0
        %s202 = scalar_select %p201, %s21, 0
        %s203 = scalar_lea.vmem %s3, %s202
      $region24: #{bottleneck_forward.3} parent=11 // pred_fallthru
        _
    $region12: #{bottleneck_forward.3} parent=5 // pred_fallthru
      _
    %p204 = scmp.lt.s32.totalorder %s10, 4
    // Predicated region
    $region25: #{bottleneck_forward.3} parent=5 // pred_check
      %p205 = pneg %p204
    $region26: #{bottleneck_forward.3} parent=5 // pred_check_branch
      %207 = sbr.rel (%p205) target = $region28
    $region27: #{bottleneck_forward.3} parent=5 // pred_region
      // Predicated region
      $region29: #{bottleneck_forward.3} parent=27 // pred_check
        %p208 = pneg %p51
      $region30: #{bottleneck_forward.3} parent=27 // pred_check_branch
        %210 = sbr.rel (%p208) target = $region32
      $region31: #{bottleneck_forward.3} parent=27 // pred_region
        %s211 = smul.u32 16, %s17
        %p212 = scmp.lt.s32.totalorder %s211, 63
        %s213 = scalar_select %p212, %s211, 63
        %p214 = scmp.lt.s32.totalorder %s19, 0
        %s215 = scalar_select %p214, %s19, 0
        %s216 = sadd.s32 %s215, %s213
        %s217 = smul.addr %s216, 4
        %s218 = scalar_lea.vmem %s0, %s217
        %s219 = smul.u32 16, %s17
      $region32: #{bottleneck_forward.3} parent=27 // pred_fallthru
        _
    $region28: #{bottleneck_forward.3} parent=5 // pred_fallthru
      _
    %p220 = scmp.le.s32.totalorder 1, %s10
    %p221 = scmp.lt.s32.totalorder %s10, 5
    %p222 = pnand %p220, %p221
    %p223 = pneg %p222
    // Predicated region
    $region33: #{bottleneck_forward.3} parent=5 // pred_check
      _
    $region34: #{bottleneck_forward.3} parent=5 // pred_check_branch
      %225 = sbr.rel (%p222) target = $region36
    $region35: #{bottleneck_forward.3} parent=5 // pred_region
      %s226 = ssub.s32 %s10, 1
      %s227 = smul.u32 16, %s20
      %p228 = scmp.lt.s32.totalorder %s227, 63
      %s229 = scalar_select %p228, %s227, 63
      %p230 = scmp.lt.s32.totalorder %s22, 0
      %s231 = scalar_select %p230, %s22, 0
      %s232 = sadd.s32 %s231, %s229
      %s233 = smul.addr %s232, 4
      %s234 = scalar_lea.vmem %s0, %s233
      %p235 = pneg %p57
      %p236 = pneg %p54
      %s237 = smul.u32 16, %s22
      %p238 = scmp.lt.s32.totalorder %s237, 15
      %s239 = scalar_select %p238, %s237, 15
      %p240 = scmp.lt.s32.totalorder %s21, 0
      %s241 = scalar_select %p240, %s21, 0
      %s242 = sadd.s32 %s241, %s239
      %s243 = smul.addr %s242, 4
      %s244 = scalar_lea.vmem %s1, %s243
      %p245 = pneg %p85
      %p246 = pneg %p82
      %p247 = scmp.lt.s32.totalorder %s21, 0
      %s248 = scalar_select %p247, %s21, 0
      %s249 = scalar_lea.vmem %s2, %s248
      %p250 = pneg %p111
      %p251 = pneg %p108
      %p252 = scmp.lt.s32.totalorder %s21, 0
      %s253 = scalar_select %p252, %s21, 0
      %s254 = scalar_lea.vmem %s3, %s253
      %p255 = pneg %p137
      %p256 = pneg %p134
      %p257 = pneg %p165
      %p258 = pneg %p162
      %s259 = smul.u32 16, %s20
      %p260 = scmp.lt.s32.totalorder %s259, 63
      %s261 = scalar_select %p260, %s259, 63
      %p262 = scmp.lt.s32.totalorder %s21, 0
      %s263 = scalar_select %p262, %s21, 0
      %s264 = sadd.s32 %s263, %s261
      %s265 = smul.addr %s264, 4
      %s266 = scalar_lea.vmem %s4, %s265
      %s267 = smul.u32 16, %s20
      %p268 = scmp.lt.s32.totalorder %s267, 63
      %s269 = scalar_select %p268, %s267, 63
      %p270 = scmp.lt.s32.totalorder %s22, 0
      %s271 = scalar_select %p270, %s22, 0
      %s272 = sadd.s32 %s271, %s269
      %s273 = smul.addr %s272, 4
      %s274 = scalar_lea.vmem %s0, %s273
      %s275 = smul.u32 16, %s20
      %s276 = smul.u32 16, %s22
      %p277 = scmp.lt.s32.totalorder %s276, 15
      %s278 = scalar_select %p277, %s276, 15
      %p279 = scmp.lt.s32.totalorder %s21, 0
      %s280 = scalar_select %p279, %s21, 0
      %s281 = sadd.s32 %s280, %s278
      %s282 = smul.addr %s281, 4
      %s283 = scalar_lea.vmem %s1, %s282
      %s284 = smul.u32 16, %s22
      %p285 = scmp.lt.s32.totalorder %s21, 0
      %s286 = scalar_select %p285, %s21, 0
      %s287 = scalar_lea.vmem %s2, %s286
      %p288 = scmp.lt.s32.totalorder %s21, 0
      %s289 = scalar_select %p288, %s21, 0
      %s290 = scalar_lea.vmem %s3, %s289
      %s291 = smul.u32 16, %s20
      %p292 = scmp.lt.s32.totalorder %s291, 63
      %s293 = scalar_select %p292, %s291, 63
      %p294 = scmp.lt.s32.totalorder %s21, 0
      %s295 = scalar_select %p294, %s21, 0
      %s296 = sadd.s32 %s295, %s293
      %s297 = smul.addr %s296, 4
      %s298 = scalar_lea.vmem %s4, %s297
      %s299 = smul.u32 16, %s20
      %p301 = scmp.eq.s32.totalorder %s22, 0
      // Predicated region
      $region37: #{bottleneck_forward.3} parent=35 // pred_check
        %p302 = pneg %p301
      $region38: #{bottleneck_forward.3} parent=35 // pred_check_branch
        %304 = sbr.rel (%p302) target = $region40
      $region39: #{bottleneck_forward.3} parent=35 // pred_region
        %305 = vst [vmem:[#allocation2] sm:$0xff] 0.0
        %306 = vst [vmem:[#allocation2 + $0x8] sm:$0xff] 0.0
        %307 = vst [vmem:[#allocation2 + $0x10] sm:$0xff] 0.0
        %308 = vst [vmem:[#allocation2 + $0x18] sm:$0xff] 0.0
        %309 = vst [vmem:[#allocation2 + $0x20] sm:$0xff] 0.0
        %310 = vst [vmem:[#allocation2 + $0x28] sm:$0xff] 0.0
        %311 = vst [vmem:[#allocation2 + $0x30] sm:$0xff] 0.0
        %312 = vst [vmem:[#allocation2 + $0x38] sm:$0xff] 0.0
        %313 = vst [vmem:[#allocation2 + $0x40] sm:$0xff] 0.0
        %314 = vst [vmem:[#allocation2 + $0x48] sm:$0xff] 0.0
        %315 = vst [vmem:[#allocation2 + $0x50] sm:$0xff] 0.0
        %316 = vst [vmem:[#allocation2 + $0x58] sm:$0xff] 0.0
        %317 = vst [vmem:[#allocation2 + $0x60] sm:$0xff] 0.0
        %318 = vst [vmem:[#allocation2 + $0x68] sm:$0xff] 0.0
        %319 = vst [vmem:[#allocation2 + $0x70] sm:$0xff] 0.0
        %320 = vst [vmem:[#allocation2 + $0x78] sm:$0xff] 0.0
      $region40: #{bottleneck_forward.3} parent=35 // pred_fallthru
        _
      %v321 = vld [vmem:[#allocation2] sm:$0xff]
      %v322 = vld [vmem:[#allocation2 + $0x8] sm:$0xff]
      %v323 = vld [vmem:[#allocation2 + $0x10] sm:$0xff]
      %v324 = vld [vmem:[#allocation2 + $0x18] sm:$0xff]
      %v325 = vld [vmem:[#allocation2 + $0x20] sm:$0xff]
      %v326 = vld [vmem:[#allocation2 + $0x28] sm:$0xff]
      %v327 = vld [vmem:[#allocation2 + $0x30] sm:$0xff]
      %v328 = vld [vmem:[#allocation2 + $0x38] sm:$0xff]
      %v329 = vld [vmem:[#allocation2 + $0x40] sm:$0xff]
      %v330 = vld [vmem:[#allocation2 + $0x48] sm:$0xff]
      %v331 = vld [vmem:[#allocation2 + $0x50] sm:$0xff]
      %v332 = vld [vmem:[#allocation2 + $0x58] sm:$0xff]
      %v333 = vld [vmem:[#allocation2 + $0x60] sm:$0xff]
      %v334 = vld [vmem:[#allocation2 + $0x68] sm:$0xff]
      %v335 = vld [vmem:[#allocation2 + $0x70] sm:$0xff]
      %v336 = vld [vmem:[#allocation2 + $0x78] sm:$0xff]
      %v337 = vld [vmem:[%s274] sm:$0xf]
      %v338 = vld [vmem:[%s274 + $0x4] sm:$0xf]
      %v339 = vld [vmem:[%s274 + $0x8] sm:$0xf]
      %v340 = vld [vmem:[%s274 + $0xc] sm:$0xf]
      %v341 = vld [vmem:[%s274 + $0x10] sm:$0xf]
      %v342 = vld [vmem:[%s274 + $0x14] sm:$0xf]
      %v343 = vld [vmem:[%s274 + $0x18] sm:$0xf]
      %v344 = vld [vmem:[%s274 + $0x1c] sm:$0xf]
      %v345 = vld [vmem:[%s274 + $0x20] sm:$0xf]
      %v346 = vld [vmem:[%s274 + $0x24] sm:$0xf]
      %v347 = vld [vmem:[%s274 + $0x28] sm:$0xf]
      %v348 = vld [vmem:[%s274 + $0x2c] sm:$0xf]
      %v349 = vld [vmem:[%s274 + $0x30] sm:$0xf]
      %v350 = vld [vmem:[%s274 + $0x34] sm:$0xf]
      %v351 = vld [vmem:[%s274 + $0x38] sm:$0xf]
      %v352 = vld [vmem:[%s274 + $0x3c] sm:$0xf]
      %v353 = vld [vmem:[%s283] sm:$0xf]
      %v354 = vld [vmem:[%s283 + $0x4] sm:$0xf]
      %v355 = vld [vmem:[%s283 + $0x8] sm:$0xf]
      %v356 = vld [vmem:[%s283 + $0xc] sm:$0xf]
      %v357 = vld [vmem:[%s283 + $0x10] sm:$0xf]
      %v358 = vld [vmem:[%s283 + $0x14] sm:$0xf]
      %v359 = vld [vmem:[%s283 + $0x18] sm:$0xf]
      %v360 = vld [vmem:[%s283 + $0x1c] sm:$0xf]
      %v361 = vld [vmem:[%s283 + $0x20] sm:$0xf]
      %v362 = vld [vmem:[%s283 + $0x24] sm:$0xf]
      %v363 = vld [vmem:[%s283 + $0x28] sm:$0xf]
      %v364 = vld [vmem:[%s283 + $0x2c] sm:$0xf]
      %v365 = vld [vmem:[%s283 + $0x30] sm:$0xf]
      %v366 = vld [vmem:[%s283 + $0x34] sm:$0xf]
      %v367 = vld [vmem:[%s283 + $0x38] sm:$0xf]
      %v368 = vld [vmem:[%s283 + $0x3c] sm:$0xf]
      %v385 = vunpack.c.l.b16 %v337
      %v386 = vunpack.c.l.b16 %v338
      %v387 = vunpack.c.l.b16 %v339
      %v388 = vunpack.c.l.b16 %v340
      %v389 = vunpack.c.l.b16 %v341
      %v390 = vunpack.c.l.b16 %v342
      %v391 = vunpack.c.l.b16 %v343
      %v392 = vunpack.c.l.b16 %v344
      %v393 = vunpack.c.l.b16 %v345
      %v394 = vunpack.c.l.b16 %v346
      %v395 = vunpack.c.l.b16 %v347
      %v396 = vunpack.c.l.b16 %v348
      %v397 = vunpack.c.l.b16 %v349
      %v398 = vunpack.c.l.b16 %v350
      %v399 = vunpack.c.l.b16 %v351
      %v400 = vunpack.c.l.b16 %v352
      %v401 = vpack.c.b16 %v386, %v385
      %v402 = vpack.c.b16 %v388, %v387
      %v403 = vpack.c.b16 %v390, %v389
      %v404 = vpack.c.b16 %v392, %v391
      %v405 = vpack.c.b16 %v394, %v393
      %v406 = vpack.c.b16 %v396, %v395
      %v407 = vpack.c.b16 %v398, %v397
      %v408 = vpack.c.b16 %v400, %v399
      %v433 = vunpack.c.l.b16 %v353
      %v434 = vunpack.c.l.b16 %v354
      %v435 = vunpack.c.l.b16 %v355
      %v436 = vunpack.c.l.b16 %v356
      %v437 = vunpack.c.l.b16 %v357
      %v438 = vunpack.c.l.b16 %v358
      %v439 = vunpack.c.l.b16 %v359
      %v440 = vunpack.c.l.b16 %v360
      %v441 = vunpack.c.l.b16 %v361
      %v442 = vunpack.c.l.b16 %v362
      %v443 = vunpack.c.l.b16 %v363
      %v444 = vunpack.c.l.b16 %v364
      %v445 = vunpack.c.l.b16 %v365
      %v446 = vunpack.c.l.b16 %v366
      %v447 = vunpack.c.l.b16 %v367
      %v448 = vunpack.c.l.b16 %v368
      %v449 = vpack.c.b16 %v434, %v433
      %v450 = vpack.c.b16 %v436, %v435
      %v451 = vpack.c.b16 %v438, %v437
      %v452 = vpack.c.b16 %v440, %v439
      %v453 = vpack.c.b16 %v442, %v441
      %v454 = vpack.c.b16 %v444, %v443
      %v455 = vpack.c.b16 %v446, %v445
      %v456 = vpack.c.b16 %v448, %v447
      %465 = vmatprep.subr.bf16.mxu0 0
      %466 = vmatpush1.bf16.msra.mxu0 %v449
      %467 = vmatprep.subr.bf16.mxu0 0
      %468 = vmatpush1.bf16.msra.mxu0 %v450
      %469 = vmatprep.subr.bf16.mxu0 0
      %470 = vmatpush1.bf16.msra.mxu0 %v451
      %471 = vmatprep.subr.bf16.mxu0 0
      %472 = vmatpush1.bf16.msra.mxu0 %v452
      %473 = vmatprep.subr.bf16.mxu0 0
      %474 = vmatpush1.bf16.msra.mxu0 %v453
      %475 = vmatprep.subr.bf16.mxu0 0
      %476 = vmatpush1.bf16.msra.mxu0 %v454
      %477 = vmatprep.subr.bf16.mxu0 0
      %478 = vmatpush1.bf16.msra.mxu0 %v455
      %479 = vmatprep.subr.bf16.mxu0 0
      %480 = vmatpush1.bf16.msra.mxu0 %v456
      %481 = vmatprep.subr.bf16.mxu0 0
      %482 = vmatpush1.bf16.msra.mxu0 0
      %483 = vmatprep.subr.bf16.mxu0 0
      %484 = vmatpush1.bf16.msra.mxu0 0
      %485 = vmatprep.subr.bf16.mxu0 0
      %486 = vmatpush1.bf16.msra.mxu0 0
      %487 = vmatprep.subr.bf16.mxu0 0
      %488 = vmatpush1.bf16.msra.mxu0 0
      %489 = vmatprep.subr.bf16.mxu0 0
      %490 = vmatpush1.bf16.msra.mxu0 0
      %491 = vmatprep.subr.bf16.mxu0 0
      %492 = vmatpush1.bf16.msra.mxu0 0
      %493 = vmatprep.subr.bf16.mxu0 0
      %494 = vmatpush1.bf16.msra.mxu0 0
      %495 = vmatprep.subr.bf16.mxu0 0
      %496 = vmatpush1.bf16.msra.mxu0 0
      %497 = vmatprep.mubr.bf16.mxu0 0
      %498 = vmatmul.mubr.bf16.gmra.mrb[0].mxu0 %v401
      %v499 = vpop.f32.mrb[0].mxu0
      %v500 = vadd.f32 0.0, %v499
      %v501 = vpop.f32.mrb[0].mxu0
      %v502 = vpop.f32.mrb[0].mxu0
      %v503 = vadd.f32 0.0, %v502
      %v504 = vpop.f32.mrb[0].mxu0
      %505 = vmatprep.mubr.bf16.mxu0 0
      %506 = vmatmul.mubr.bf16.gmra.mrb[0].mxu0 %v402
      %v507 = vpop.f32.mrb[0].mxu0
      %v508 = vadd.f32 0.0, %v507
      %v509 = vpop.f32.mrb[0].mxu0
      %v510 = vpop.f32.mrb[0].mxu0
      %v511 = vadd.f32 0.0, %v510
      %v512 = vpop.f32.mrb[0].mxu0
      %513 = vmatprep.mubr.bf16.mxu0 0
      %514 = vmatmul.mubr.bf16.gmra.mrb[0].mxu0 %v403
      %v515 = vpop.f32.mrb[0].mxu0
      %v516 = vadd.f32 0.0, %v515
      %v517 = vpop.f32.mrb[0].mxu0
      %v518 = vpop.f32.mrb[0].mxu0
      %v519 = vadd.f32 0.0, %v518
      %v520 = vpop.f32.mrb[0].mxu0
      %521 = vmatprep.mubr.bf16.mxu0 0
      %522 = vmatmul.mubr.bf16.gmra.mrb[0].mxu0 %v404
      %v523 = vpop.f32.mrb[0].mxu0
      %v524 = vadd.f32 0.0, %v523
      %v525 = vpop.f32.mrb[0].mxu0
      %v526 = vpop.f32.mrb[0].mxu0
      %v527 = vadd.f32 0.0, %v526
      %v528 = vpop.f32.mrb[0].mxu0
      %529 = vmatprep.mubr.bf16.mxu0 0
      %530 = vmatmul.mubr.bf16.gmra.mrb[0].mxu0 %v405
      %v531 = vpop.f32.mrb[0].mxu0
      %v532 = vadd.f32 0.0, %v531
      %v533 = vpop.f32.mrb[0].mxu0
      %v534 = vpop.f32.mrb[0].mxu0
      %v535 = vadd.f32 0.0, %v534
      %v536 = vpop.f32.mrb[0].mxu0
      %537 = vmatprep.mubr.bf16.mxu0 0
      %538 = vmatmul.mubr.bf16.gmra.mrb[0].mxu0 %v406
      %v539 = vpop.f32.mrb[0].mxu0
      %v540 = vadd.f32 0.0, %v539
      %v541 = vpop.f32.mrb[0].mxu0
      %v542 = vpop.f32.mrb[0].mxu0
      %v543 = vadd.f32 0.0, %v542
      %v544 = vpop.f32.mrb[0].mxu0
      %545 = vmatprep.mubr.bf16.mxu0 0
      %546 = vmatmul.mubr.bf16.gmra.mrb[0].mxu0 %v407
      %v547 = vpop.f32.mrb[0].mxu0
      %v548 = vadd.f32 0.0, %v547
      %v549 = vpop.f32.mrb[0].mxu0
      %v550 = vpop.f32.mrb[0].mxu0
      %v551 = vadd.f32 0.0, %v550
      %v552 = vpop.f32.mrb[0].mxu0
      %553 = vmatprep.mubr.bf16.mxu0 0
      %554 = vmatmul.mubr.bf16.gmra.mrb[0].mxu0 %v408
      %v555 = vpop.f32.mrb[0].mxu0
      %v556 = vadd.f32 0.0, %v555
      %v557 = vpop.f32.mrb[0].mxu0
      %v558 = vpop.f32.mrb[0].mxu0
      %v559 = vadd.f32 0.0, %v558
      %v560 = vpop.f32.mrb[0].mxu0
      %561 = vdwg.mxu0
      %v562 = vadd.f32 %v321, %v500
      %v563 = vadd.f32 %v322, %v503
      %v564 = vadd.f32 %v323, %v508
      %v565 = vadd.f32 %v324, %v511
      %v566 = vadd.f32 %v325, %v516
      %v567 = vadd.f32 %v326, %v519
      %v568 = vadd.f32 %v327, %v524
      %v569 = vadd.f32 %v328, %v527
      %v570 = vadd.f32 %v329, %v532
      %v571 = vadd.f32 %v330, %v535
      %v572 = vadd.f32 %v331, %v540
      %v573 = vadd.f32 %v332, %v543
      %v574 = vadd.f32 %v333, %v548
      %v575 = vadd.f32 %v334, %v551
      %v576 = vadd.f32 %v335, %v556
      %v577 = vadd.f32 %v336, %v559
      %578 = vst [vmem:[#allocation2] sm:$0xff] %v562
      %579 = vst [vmem:[#allocation2 + $0x8] sm:$0xff] %v563
      %580 = vst [vmem:[#allocation2 + $0x10] sm:$0xff] %v564
      %581 = vst [vmem:[#allocation2 + $0x18] sm:$0xff] %v565
      %582 = vst [vmem:[#allocation2 + $0x20] sm:$0xff] %v566
      %583 = vst [vmem:[#allocation2 + $0x28] sm:$0xff] %v567
      %584 = vst [vmem:[#allocation2 + $0x30] sm:$0xff] %v568
      %585 = vst [vmem:[#allocation2 + $0x38] sm:$0xff] %v569
      %586 = vst [vmem:[#allocation2 + $0x40] sm:$0xff] %v570
      %587 = vst [vmem:[#allocation2 + $0x48] sm:$0xff] %v571
      %588 = vst [vmem:[#allocation2 + $0x50] sm:$0xff] %v572
      %589 = vst [vmem:[#allocation2 + $0x58] sm:$0xff] %v573
      %590 = vst [vmem:[#allocation2 + $0x60] sm:$0xff] %v574
      %591 = vst [vmem:[#allocation2 + $0x68] sm:$0xff] %v575
      %592 = vst [vmem:[#allocation2 + $0x70] sm:$0xff] %v576
      %593 = vst [vmem:[#allocation2 + $0x78] sm:$0xff] %v577
      // Predicated region
      $region41: #{bottleneck_forward.3} parent=35 // pred_check
        %p594 = pneg %p301
      $region42: #{bottleneck_forward.3} parent=35 // pred_check_branch
        %596 = sbr.rel (%p594) target = $region44
      $region43: #{bottleneck_forward.3} parent=35 // pred_region
        %v597 = vld [vmem:[#allocation2] sm:$0xff]
        %v598 = vld [vmem:[#allocation2 + $0x8] sm:$0xff]
        %v599 = vld [vmem:[#allocation2 + $0x10] sm:$0xff]
        %v600 = vld [vmem:[#allocation2 + $0x18] sm:$0xff]
        %v601 = vld [vmem:[#allocation2 + $0x20] sm:$0xff]
        %v602 = vld [vmem:[#allocation2 + $0x28] sm:$0xff]
        %v603 = vld [vmem:[#allocation2 + $0x30] sm:$0xff]
        %v604 = vld [vmem:[#allocation2 + $0x38] sm:$0xff]
        %v605 = vld [vmem:[#allocation2 + $0x40] sm:$0xff]
        %v606 = vld [vmem:[#allocation2 + $0x48] sm:$0xff]
        %v607 = vld [vmem:[#allocation2 + $0x50] sm:$0xff]
        %v608 = vld [vmem:[#allocation2 + $0x58] sm:$0xff]
        %v609 = vld [vmem:[#allocation2 + $0x60] sm:$0xff]
        %v610 = vld [vmem:[#allocation2 + $0x68] sm:$0xff]
        %v611 = vld [vmem:[#allocation2 + $0x70] sm:$0xff]
        %v612 = vld [vmem:[#allocation2 + $0x78] sm:$0xff]
        %v613 = vld [vmem:[%s287] sm:$0x1]
        %v615 = vlaneseq
        %v616 = vshrl.u32 %v615, 7
        %v617 = vsub.s32 0, %v616
        %v618 = vrot.slane %v613, %v617
        %v620 = vmul.f32 %v597, %v618
        %v621 = vmul.f32 %v598, %v618
        %v622 = vmul.f32 %v599, %v618
        %v623 = vmul.f32 %v600, %v618
        %v624 = vmul.f32 %v601, %v618
        %v625 = vmul.f32 %v602, %v618
        %v626 = vmul.f32 %v603, %v618
        %v627 = vmul.f32 %v604, %v618
        %v628 = vmul.f32 %v605, %v618
        %v629 = vmul.f32 %v606, %v618
        %v630 = vmul.f32 %v607, %v618
        %v631 = vmul.f32 %v608, %v618
        %v632 = vmul.f32 %v609, %v618
        %v633 = vmul.f32 %v610, %v618
        %v634 = vmul.f32 %v611, %v618
        %v635 = vmul.f32 %v612, %v618
        %v636 = vld [vmem:[%s290] sm:$0x1]
        %v638 = vlaneseq
        %v639 = vshrl.u32 %v638, 7
        %v640 = vsub.s32 0, %v639
        %v641 = vrot.slane %v636, %v640
        %v643 = vadd.f32 %v620, %v641
        %v644 = vadd.f32 %v621, %v641
        %v645 = vadd.f32 %v622, %v641
        %v646 = vadd.f32 %v623, %v641
        %v647 = vadd.f32 %v624, %v641
        %v648 = vadd.f32 %v625, %v641
        %v649 = vadd.f32 %v626, %v641
        %v650 = vadd.f32 %v627, %v641
        %v651 = vadd.f32 %v628, %v641
        %v652 = vadd.f32 %v629, %v641
        %v653 = vadd.f32 %v630, %v641
        %v654 = vadd.f32 %v631, %v641
        %v655 = vadd.f32 %v632, %v641
        %v656 = vadd.f32 %v633, %v641
        %v657 = vadd.f32 %v634, %v641
        %v658 = vadd.f32 %v635, %v641
        %v659 = vmax.f32 %v643, 0.0
        %v660 = vmax.f32 %v644, 0.0
        %v661 = vmax.f32 %v645, 0.0
        %v662 = vmax.f32 %v646, 0.0
        %v663 = vmax.f32 %v647, 0.0
        %v664 = vmax.f32 %v648, 0.0
        %v665 = vmax.f32 %v649, 0.0
        %v666 = vmax.f32 %v650, 0.0
        %v667 = vmax.f32 %v651, 0.0
        %v668 = vmax.f32 %v652, 0.0
        %v669 = vmax.f32 %v653, 0.0
        %v670 = vmax.f32 %v654, 0.0
        %v671 = vmax.f32 %v655, 0.0
        %v672 = vmax.f32 %v656, 0.0
        %v673 = vmax.f32 %v657, 0.0
        %v674 = vmax.f32 %v658, 0.0
        %v675 = vpack.c.bf16 %v660, %v659
        %v676 = vpack.c.bf16 %v662, %v661
        %v677 = vpack.c.bf16 %v664, %v663
        %v678 = vpack.c.bf16 %v666, %v665
        %v679 = vpack.c.bf16 %v668, %v667
        %v680 = vpack.c.bf16 %v670, %v669
        %v681 = vpack.c.bf16 %v672, %v671
        %v682 = vpack.c.bf16 %v674, %v673
        %v691 = vunpack.c.l.b16 %v675
        %v692 = vunpack.c.h.b16 %v675
        %v693 = vunpack.c.l.b16 %v676
        %v694 = vunpack.c.h.b16 %v676
        %v695 = vunpack.c.l.b16 %v677
        %v696 = vunpack.c.h.b16 %v677
        %v697 = vunpack.c.l.b16 %v678
        %v698 = vunpack.c.h.b16 %v678
        %v699 = vunpack.c.l.b16 %v679
        %v700 = vunpack.c.h.b16 %v679
        %v701 = vunpack.c.l.b16 %v680
        %v702 = vunpack.c.h.b16 %v680
        %v703 = vunpack.c.l.b16 %v681
        %v704 = vunpack.c.h.b16 %v681
        %v705 = vunpack.c.l.b16 %v682
        %v706 = vunpack.c.h.b16 %v682
        %v707 = vpack.c.b16 %v691, %v691
        %v708 = vpack.c.b16 %v692, %v692
        %v709 = vpack.c.b16 %v693, %v693
        %v710 = vpack.c.b16 %v694, %v694
        %v711 = vpack.c.b16 %v695, %v695
        %v712 = vpack.c.b16 %v696, %v696
        %v713 = vpack.c.b16 %v697, %v697
        %v714 = vpack.c.b16 %v698, %v698
        %v715 = vpack.c.b16 %v699, %v699
        %v716 = vpack.c.b16 %v700, %v700
        %v717 = vpack.c.b16 %v701, %v701
        %v718 = vpack.c.b16 %v702, %v702
        %v719 = vpack.c.b16 %v703, %v703
        %v720 = vpack.c.b16 %v704, %v704
        %v721 = vpack.c.b16 %v705, %v705
        %v722 = vpack.c.b16 %v706, %v706
        %739 = vst [vmem:[%s298] sm:$0xf] %v707
        %740 = vst [vmem:[%s298 + $0x4] sm:$0xf] %v708
        %741 = vst [vmem:[%s298 + $0x8] sm:$0xf] %v709
        %742 = vst [vmem:[%s298 + $0xc] sm:$0xf] %v710
        %743 = vst [vmem:[%s298 + $0x10] sm:$0xf] %v711
        %744 = vst [vmem:[%s298 + $0x14] sm:$0xf] %v712
        %745 = vst [vmem:[%s298 + $0x18] sm:$0xf] %v713
        %746 = vst [vmem:[%s298 + $0x1c] sm:$0xf] %v714
        %747 = vst [vmem:[%s298 + $0x20] sm:$0xf] %v715
        %748 = vst [vmem:[%s298 + $0x24] sm:$0xf] %v716
        %749 = vst [vmem:[%s298 + $0x28] sm:$0xf] %v717
        %750 = vst [vmem:[%s298 + $0x2c] sm:$0xf] %v718
        %751 = vst [vmem:[%s298 + $0x30] sm:$0xf] %v719
        %752 = vst [vmem:[%s298 + $0x34] sm:$0xf] %v720
        %753 = vst [vmem:[%s298 + $0x38] sm:$0xf] %v721
        %754 = vst [vmem:[%s298 + $0x3c] sm:$0xf] %v722
      $region44: #{bottleneck_forward.3} parent=35 // pred_fallthru
        _
      %s755 = smul.u32 16, %s20
      %p756 = scmp.lt.s32.totalorder %s755, 63
      %s757 = scalar_select %p756, %s755, 63
      %p758 = scmp.lt.s32.totalorder %s21, 0
      %s759 = scalar_select %p758, %s21, 0
      %s760 = sadd.s32 %s759, %s757
      %s761 = smul.addr %s760, 4
      %s762 = scalar_lea.vmem %s4, %s761
      // Predicated region
      $region45: #{bottleneck_forward.3} parent=35 // pred_check
        %p763 = pneg %p162
      $region46: #{bottleneck_forward.3} parent=35 // pred_check_branch
        %765 = sbr.rel (%p763) target = $region48
      $region47: #{bottleneck_forward.3} parent=35 // pred_region
        %s766 = smul.u32 16, %s20
      $region48: #{bottleneck_forward.3} parent=35 // pred_fallthru
        _
    $region36: #{bottleneck_forward.3} parent=5 // pred_fallthru
      _
    %p767 = scmp.le.s32.totalorder 2, %s10
    // Predicated region
    $region49: #{bottleneck_forward.3} parent=5 // pred_check
      %p768 = pneg %p767
    $region50: #{bottleneck_forward.3} parent=5 // pred_check_branch
      %770 = sbr.rel (%p768) target = $region52
    $region51: #{bottleneck_forward.3} parent=5 // pred_region
      %s771 = ssub.s32 %s10, 2
      // Predicated region
      $region53: #{bottleneck_forward.3} parent=51 // pred_check
        %p772 = pneg %p168
      $region54: #{bottleneck_forward.3} parent=51 // pred_check_branch
        %774 = sbr.rel (%p772) target = $region56
      $region55: #{bottleneck_forward.3} parent=51 // pred_region
        %s775 = smul.u32 16, %s23
        %p776 = scmp.lt.s32.totalorder %s775, 63
        %s777 = scalar_select %p776, %s775, 63
        %p778 = scmp.lt.s32.totalorder %s24, 0
        %s779 = scalar_select %p778, %s24, 0
        %s780 = sadd.s32 %s779, %s777
        %s781 = smul.addr %s780, 4
        %s782 = scalar_lea.vmem %s4, %s781
      $region56: #{bottleneck_forward.3} parent=51 // pred_fallthru
        _
    $region52: #{bottleneck_forward.3} parent=5 // pred_fallthru
      _
  $region6: #{bottleneck_forward.3} parent=0 // loop_footer
    %s14 = sadd.s32 1, %s10
  $region7: #{bottleneck_forward.3} parent=0 // loop_footer_branch
    %9 = sbr.rel target = $region3
  $region8: #{bottleneck_forward.3} parent=0 // loop_exit
    _

// kernel: bottleneck_forward.4
$region0: #{bottleneck_forward.4}
  #allocation0 [shape = 'u32[]', space=smem, size = 0x4, offset = 0x4, fixed_abs, tag = 'smem constant byte address 0x4 - core index']
  #allocation1 [shape = 'u32[144,128]{1,0:T(1,128)}', space=vmem, size = 0x12000, scoped, tag = 'internal scratch']
  %s0 = inlined_call_operand.vmem [shape: bf16[8,9,9,128], index: 0, kind: input, shape index: {}]
  %s1 = inlined_call_operand.vmem [shape: bf16[1152,128], index: 1, kind: input, shape index: {}]
  %s2 = inlined_call_operand.vmem [shape: f32[1,128], index: 2, kind: input, shape index: {}]
  %s3 = inlined_call_operand.vmem [shape: f32[1,128], index: 3, kind: input, shape index: {}]
  %s4 = inlined_call_operand.vmem [shape: bf16[2,8,8,128], index: 4, kind: output, shape index: {}]
  %s5 = sld [smem:[#allocation0]]
  $region49: #{bottleneck_forward.4} parent=0
    _
  %s7 = ssub.s32 1, %s5
  %s8 = scalar_select 0, %s7, %s5
  loop: start=0, step=1, limit=18
  $region2: #{bottleneck_forward.4} parent=0 // loop_pre_header
    _
  $region3: #{bottleneck_forward.4} parent=0 // loop_header
    %s10 = sphi 0, %s14
    %p11 = scmp.ge.s32.totalorder %s10, 18
    %s17 = sphi 0, %s29
    %s18 = sphi 0, %s25
    %s19 = sphi 0, %s17
    %s20 = sphi 0, %s18
    %s21 = sphi 0, %s19
    %s22 = sphi 0, %s20
    %s32 = sphi 0, %s34
    %s35 = sphi 0, %s32
    %s36 = sphi 0, %s35
    %s52 = sphi 0, %s36
    %s56 = sphi 0, %s56
    %s58 = sphi 0, %s56
    %s59 = sphi 0, %s58
    %s73 = sphi 0, %s59
    %s77 = sphi 0, %s77
    %s79 = sphi 0, %s77
    %s80 = sphi 0, %s79
    %s94 = sphi 0, %s80
    %s98 = sphi 0, %s98
    %s100 = sphi 0, %s98
    %s101 = sphi 0, %s100
    %s115 = sphi 0, %s101
    %s123 = sphi 0, %s125
    %s126 = sphi 0, %s123
    %s127 = sphi 0, %s126
    %s143 = sphi 0, %s127
  $region4: #{bottleneck_forward.4} parent=0 // loop_header_branch
    %13 = sbr.rel (%p11) target = $region8
  $region5: #{bottleneck_forward.4} parent=0 // loop_body
    %s15 = ssub.s32 %s10, 1
    %s16 = ssub.s32 %s10, 2
    %s23 = sadd.s32 1, %s18
    %p24 = scmp.ge.s32.totalorder %s23, 8
    %s25 = scalar_select %p24, 0, %s23
    %s26 = sadd.s32 1, %s17
    %s27 = scalar_select %p24, %s26, %s17
    %p28 = scmp.ge.s32.totalorder %s27, 2
    %s29 = scalar_select %p28, 0, %s27
    %s30 = ssub.s32 %s17, %s29
    %p31 = scmp.eq.s32.totalorder %s30, 0
    %s33 = sadd.s32 %s32, 1
    %s34 = scalar_select %p31, %s32, %s33
    %p37 = pneg %p31
    %p38 = scmp.eq.s32.totalorder %s10, 15
    %p39 = por %p37, %p38
    %p40 = scmp.ne.s32.totalorder %s32, %s35
    %p41 = scmp.eq.s32.totalorder %s10, 0
    %p42 = por %p40, %p41
    %p43 = scmp.ne.s32.totalorder %s32, %s35
    %p44 = scmp.eq.s32.totalorder %s15, 15
    %p45 = por %p43, %p44
    %p46 = scmp.ne.s32.totalorder %s35, %s36
    %p47 = scmp.eq.s32.totalorder %s15, 0
    %p48 = por %p46, %p47
    %p49 = scmp.ne.s32.totalorder %s35, %s36
    %p50 = scmp.eq.s32.totalorder %s16, 15
    %p51 = por %p49, %p50
    %p53 = scmp.ne.s32.totalorder %s36, %s52
    %p54 = scmp.eq.s32.totalorder %s16, 0
    %p55 = por %p53, %p54
    %s57 = sadd.s32 %s56, 1
    %p60 = scmp.eq.s32.totalorder %s10, 15
    %p61 = scmp.ne.s32.totalorder %s56, %s58
    %p62 = scmp.eq.s32.totalorder %s10, 0
    %p63 = por %p61, %p62
    %p64 = scmp.ne.s32.totalorder %s56, %s58
    %p65 = scmp.eq.s32.totalorder %s15, 15
    %p66 = por %p64, %p65
    %p67 = scmp.ne.s32.totalorder %s58, %s59
    %p68 = scmp.eq.s32.totalorder %s15, 0
    %p69 = por %p67, %p68
    %p70 = scmp.ne.s32.totalorder %s58, %s59
    %p71 = scmp.eq.s32.totalorder %s16, 15
    %p72 = por %p70, %p71
    %p74 = scmp.ne.s32.totalorder %s59, %s73
    %p75 = scmp.eq.s32.totalorder %s16, 0
    %p76 = por %p74, %p75
    %s78 = sadd.s32 %s77, 1
    %p81 = scmp.eq.s32.totalorder %s10, 15
    %p82 = scmp.ne.s32.totalorder %s77, %s79
    %p83 = scmp.eq.s32.totalorder %s10, 0
    %p84 = por %p82, %p83
    %p85 = scmp.ne.s32.totalorder %s77, %s79
    %p86 = scmp.eq.s32.totalorder %s15, 15
    %p87 = por %p85, %p86
    %p88 = scmp.ne.s32.totalorder %s79, %s80
    %p89 = scmp.eq.s32.totalorder %s15, 0
    %p90 = por %p88, %p89
    %p91 = scmp.ne.s32.totalorder %s79, %s80
    %p92 = scmp.eq.s32.totalorder %s16, 15
    %p93 = por %p91, %p92
    %p95 = scmp.ne.s32.totalorder %s80, %s94
    %p96 = scmp.eq.s32.totalorder %s16, 0
    %p97 = por %p95, %p96
    %s99 = sadd.s32 %s98, 1
    %p102 = scmp.eq.s32.totalorder %s10, 15
    %p103 = scmp.ne.s32.totalorder %s98, %s100
    %p104 = scmp.eq.s32.totalorder %s10, 0
    %p105 = por %p103, %p104
    %p106 = scmp.ne.s32.totalorder %s98, %s100
    %p107 = scmp.eq.s32.totalorder %s15, 15
    %p108 = por %p106, %p107
    %p109 = scmp.ne.s32.totalorder %s100, %s101
    %p110 = scmp.eq.s32.totalorder %s15, 0
    %p111 = por %p109, %p110
    %p112 = scmp.ne.s32.totalorder %s100, %s101
    %p113 = scmp.eq.s32.totalorder %s16, 15
    %p114 = por %p112, %p113
    %p116 = scmp.ne.s32.totalorder %s101, %s115
    %p117 = scmp.eq.s32.totalorder %s16, 0
    %p118 = por %p116, %p117
    %s119 = ssub.s32 %s17, %s29
    %s120 = ssub.s32 %s18, %s25
    %s121 = sor.u32 %s119, %s120
    %p122 = scmp.eq.s32.totalorder %s121, 0
    %s124 = sadd.s32 %s123, 1
    %s125 = scalar_select %p122, %s123, %s124
    %p128 = pneg %p122
    %p129 = scmp.eq.s32.totalorder %s10, 15
    %p130 = por %p128, %p129
    %p131 = scmp.ne.s32.totalorder %s123, %s126
    %p132 = scmp.eq.s32.totalorder %s10, 0
    %p133 = por %p131, %p132
    %p134 = scmp.ne.s32.totalorder %s123, %s126
    %p135 = scmp.eq.s32.totalorder %s15, 15
    %p136 = por %p134, %p135
    %p137 = scmp.ne.s32.totalorder %s126, %s127
    %p138 = scmp.eq.s32.totalorder %s15, 0
    %p139 = por %p137, %p138
    %p140 = scmp.ne.s32.totalorder %s126, %s127
    %p141 = scmp.eq.s32.totalorder %s16, 15
    %p142 = por %p140, %p141
    %p144 = scmp.ne.s32.totalorder %s127, %s143
    %p145 = scmp.eq.s32.totalorder %s16, 0
    %p146 = por %p144, %p145
    %p147 = scmp.le.s32.totalorder 1, %s10
    %p148 = scmp.lt.s32.totalorder %s10, 17
    %p149 = pnand %p147, %p148
    %p150 = pneg %p149
    // Predicated region
    $region9: #{bottleneck_forward.4} parent=5 // pred_check
      _
    $region10: #{bottleneck_forward.4} parent=5 // pred_check_branch
      %152 = sbr.rel (%p149) target = $region12
    $region11: #{bottleneck_forward.4} parent=5 // pred_region
      %s153 = ssub.s32 %s10, 1
      // Predicated region
      $region13: #{bottleneck_forward.4} parent=11 // pred_check
        %p154 = pneg %p69
      $region14: #{bottleneck_forward.4} parent=11 // pred_check_branch
        %156 = sbr.rel (%p154) target = $region16
      $region15: #{bottleneck_forward.4} parent=11 // pred_region
        _
      $region16: #{bottleneck_forward.4} parent=11 // pred_fallthru
        _
      // Predicated region
      $region17: #{bottleneck_forward.4} parent=11 // pred_check
        %p157 = pneg %p90
      $region18: #{bottleneck_forward.4} parent=11 // pred_check_branch
        %159 = sbr.rel (%p157) target = $region20
      $region19: #{bottleneck_forward.4} parent=11 // pred_region
        _
      $region20: #{bottleneck_forward.4} parent=11 // pred_fallthru
        _
      // Predicated region
      $region21: #{bottleneck_forward.4} parent=11 // pred_check
        %p160 = pneg %p111
      $region22: #{bottleneck_forward.4} parent=11 // pred_check_branch
        %162 = sbr.rel (%p160) target = $region24
      $region23: #{bottleneck_forward.4} parent=11 // pred_region
        _
      $region24: #{bottleneck_forward.4} parent=11 // pred_fallthru
        _
    $region12: #{bottleneck_forward.4} parent=5 // pred_fallthru
      _
    %p163 = scmp.lt.s32.totalorder %s10, 16
    // Predicated region
    $region25: #{bottleneck_forward.4} parent=5 // pred_check
      %p164 = pneg %p163
    $region26: #{bottleneck_forward.4} parent=5 // pred_check_branch
      %166 = sbr.rel (%p164) target = $region28
    $region27: #{bottleneck_forward.4} parent=5 // pred_region
      // Predicated region
      $region29: #{bottleneck_forward.4} parent=27 // pred_check
        %p167 = pneg %p42
      $region30: #{bottleneck_forward.4} parent=27 // pred_check_branch
        %169 = sbr.rel (%p167) target = $region32
      $region31: #{bottleneck_forward.4} parent=27 // pred_region
        %s170 = smul.u32 4, %s17
        %p171 = scmp.lt.s32.totalorder %s170, 7
        %s172 = scalar_select %p171, %s170, 7
        %s173 = smul.addr %s172, 18
        %s174 = smul.addr %s173, 4
        %s175 = scalar_lea.vmem %s0, %s174
        %s176 = smul.u32 4, %s17
      $region32: #{bottleneck_forward.4} parent=27 // pred_fallthru
        _
    $region28: #{bottleneck_forward.4} parent=5 // pred_fallthru
      _
    %p177 = scmp.le.s32.totalorder 1, %s10
    %p178 = scmp.lt.s32.totalorder %s10, 17
    %p179 = pnand %p177, %p178
    %p180 = pneg %p179
    // Predicated region
    $region33: #{bottleneck_forward.4} parent=5 // pred_check
      _
    $region34: #{bottleneck_forward.4} parent=5 // pred_check_branch
      %182 = sbr.rel (%p179) target = $region36
    $region35: #{bottleneck_forward.4} parent=5 // pred_region
      %s183 = ssub.s32 %s10, 1
      %s184 = smul.u32 4, %s19
      %p185 = scmp.lt.s32.totalorder %s184, 7
      %s186 = scalar_select %p185, %s184, 7
      %s187 = smul.addr %s186, 18
      %s188 = smul.addr %s187, 4
      %s189 = scalar_lea.vmem %s0, %s188
      %p190 = pneg %p48
      %p191 = pneg %p45
      %p192 = pneg %p69
      %p193 = pneg %p66
      %p194 = pneg %p90
      %p195 = pneg %p87
      %p196 = pneg %p111
      %p197 = pneg %p108
      %p198 = pneg %p139
      %p199 = pneg %p136
      %p200 = scmp.lt.s32.totalorder %s19, 1
      %s201 = scalar_select %p200, %s19, 1
      %p202 = scmp.lt.s32.totalorder %s20, 7
      %s203 = scalar_select %p202, %s20, 7
      %s204 = smul.addr %s201, 8
      %s205 = sadd.s32 %s203, %s204
      %s206 = smul.addr %s205, 4
      %s207 = scalar_lea.vmem %s4, %s206
      %s208 = smul.u32 4, %s19
      %p209 = scmp.lt.s32.totalorder %s208, 7
      %s210 = scalar_select %p209, %s208, 7
      %s211 = smul.addr %s210, 18
      %s212 = smul.addr %s211, 4
      %s213 = scalar_lea.vmem %s0, %s212
      %s214 = smul.u32 4, %s19
      %p215 = scmp.lt.s32.totalorder %s19, 1
      %s216 = scalar_select %p215, %s19, 1
      %p217 = scmp.lt.s32.totalorder %s20, 7
      %s218 = scalar_select %p217, %s20, 7
      %s219 = smul.addr %s216, 8
      %s220 = sadd.s32 %s218, %s219
      %s221 = smul.addr %s220, 4
      %s222 = scalar_lea.vmem %s4, %s221
      %s224 = smul.u32 %s20, 2
      %s225 = smul.addr %s224, 4
      %s226 = scalar_lea.vmem %s213, %s225
      %v227 = vld [vmem:[%s226] sm:$0xf]
      %s228 = sadd.s32 %s224, 18
      %s229 = smul.addr %s228, 4
      %s230 = scalar_lea.vmem %s213, %s229
      %v231 = vld [vmem:[%s230] sm:$0xf]
      %v232 = vld [vmem:[%s226 + $0x4] sm:$0x1]
      %s233 = sadd.s32 %s224, 36
      %s234 = smul.addr %s233, 4
      %s235 = scalar_lea.vmem %s213, %s234
      %v236 = vld [vmem:[%s235] sm:$0xf]
      %s237 = sadd.s32 %s224, 54
      %s238 = smul.addr %s237, 4
      %s239 = scalar_lea.vmem %s213, %s238
      %v240 = vld [vmem:[%s239] sm:$0xf]
      %v241 = vld [vmem:[%s235 + $0x4] sm:$0x1]
      %s242 = sadd.s32 %s20, 1
      %s243 = smul.u32 %s242, 2
      %s244 = smul.addr %s243, 4
      %s245 = scalar_lea.vmem %s213, %s244
      %v246 = vld [vmem:[%s245] sm:$0xf]
      %s247 = sadd.s32 %s243, 18
      %s248 = smul.addr %s247, 4
      %s249 = scalar_lea.vmem %s213, %s248
      %v250 = vld [vmem:[%s249] sm:$0xf]
      %v251 = vld [vmem:[%s245 + $0x4] sm:$0x1]
      %v254 = vunpack.c.l.b16 %v227
      %v255 = vunpack.c.l.b16 %v232
      %v256 = vpack.c.b16 %v255, %v254
      %v258 = vshrl.u32 %v256, 16
      %v260 = vshll.u32 %v256, 16
      %v262 = vrot.slane %v260, 1
      %v263 = vor.u32 %v258, %v262
      %v267 = vunpack.c.l.b16 %v236
      %v268 = vunpack.c.l.b16 %v241
      %v269 = vpack.c.b16 %v268, %v267
      %v271 = vshrl.u32 %v269, 16
      %v273 = vshll.u32 %v269, 16
      %v275 = vrot.slane %v273, 1
      %v276 = vor.u32 %v271, %v275
      %v280 = vunpack.c.l.b16 %v246
      %v281 = vunpack.c.l.b16 %v251
      %v282 = vpack.c.b16 %v281, %v280
      %v284 = vshrl.u32 %v282, 16
      %v286 = vshll.u32 %v282, 16
      %v288 = vrot.slane %v286, 1
      %v289 = vor.u32 %v284, %v288
      %v291 = vld [vmem:[%s1] sm:$0xf]
      %v292 = vld [vmem:[%s1 + $0x4] sm:$0xf]
      %v293 = vld [vmem:[%s1 + $0x8] sm:$0xf]
      %v294 = vld [vmem:[%s1 + $0xc] sm:$0xf]
      %v295 = vld [vmem:[%s1 + $0x10] sm:$0xf]
      %v296 = vld [vmem:[%s1 + $0x14] sm:$0xf]
      %v297 = vld [vmem:[%s1 + $0x18] sm:$0xf]
      %v298 = vld [vmem:[%s1 + $0x1c] sm:$0xf]
      %v299 = vld [vmem:[%s1 + $0x20] sm:$0xf]
      %v300 = vld [vmem:[%s1 + $0x24] sm:$0xf]
      %v301 = vld [vmem:[%s1 + $0x28] sm:$0xf]
      %v302 = vld [vmem:[%s1 + $0x2c] sm:$0xf]
      %v303 = vld [vmem:[%s1 + $0x30] sm:$0xf]
      %v304 = vld [vmem:[%s1 + $0x34] sm:$0xf]
      %v305 = vld [vmem:[%s1 + $0x38] sm:$0xf]
      %v306 = vld [vmem:[%s1 + $0x3c] sm:$0xf]
      %v307 = vld [vmem:[%s1 + $0x40] sm:$0xf]
      %v308 = vld [vmem:[%s1 + $0x44] sm:$0xf]
      %v309 = vld [vmem:[%s1 + $0x48] sm:$0xf]
      %v310 = vld [vmem:[%s1 + $0x4c] sm:$0xf]
      %v311 = vld [vmem:[%s1 + $0x50] sm:$0xf]
      %v312 = vld [vmem:[%s1 + $0x54] sm:$0xf]
      %v313 = vld [vmem:[%s1 + $0x58] sm:$0xf]
      %v314 = vld [vmem:[%s1 + $0x5c] sm:$0xf]
      %v315 = vld [vmem:[%s1 + $0x60] sm:$0xf]
      %v316 = vld [vmem:[%s1 + $0x64] sm:$0xf]
      %v317 = vld [vmem:[%s1 + $0x68] sm:$0xf]
      %v318 = vld [vmem:[%s1 + $0x6c] sm:$0xf]
      %v319 = vld [vmem:[%s1 + $0x70] sm:$0xf]
      %v320 = vld [vmem:[%s1 + $0x74] sm:$0xf]
      %v321 = vld [vmem:[%s1 + $0x78] sm:$0xf]
      %v322 = vld [vmem:[%s1 + $0x7c] sm:$0xf]
      %v323 = vld [vmem:[%s1 + $0x80] sm:$0xf]
      %v324 = vld [vmem:[%s1 + $0x84] sm:$0xf]
      %v325 = vld [vmem:[%s1 + $0x88] sm:$0xf]
      %v326 = vld [vmem:[%s1 + $0x8c] sm:$0xf]
      %v327 = vld [vmem:[%s1 + $0x90] sm:$0xf]
      %v328 = vld [vmem:[%s1 + $0x94] sm:$0xf]
      %v329 = vld [vmem:[%s1 + $0x98] sm:$0xf]
      %v330 = vld [vmem:[%s1 + $0x9c] sm:$0xf]
      %v331 = vld [vmem:[%s1 + $0xa0] sm:$0xf]
      %v332 = vld [vmem:[%s1 + $0xa4] sm:$0xf]
      %v333 = vld [vmem:[%s1 + $0xa8] sm:$0xf]
      %v334 = vld [vmem:[%s1 + $0xac] sm:$0xf]
      %v335 = vld [vmem:[%s1 + $0xb0] sm:$0xf]
      %v336 = vld [vmem:[%s1 + $0xb4] sm:$0xf]
      %v337 = vld [vmem:[%s1 + $0xb8] sm:$0xf]
      %v338 = vld [vmem:[%s1 + $0xbc] sm:$0xf]
      %v339 = vld [vmem:[%s1 + $0xc0] sm:$0xf]
      %v340 = vld [vmem:[%s1 + $0xc4] sm:$0xf]
      %v341 = vld [vmem:[%s1 + $0xc8] sm:$0xf]
      %v342 = vld [vmem:[%s1 + $0xcc] sm:$0xf]
      %v343 = vld [vmem:[%s1 + $0xd0] sm:$0xf]
      %v344 = vld [vmem:[%s1 + $0xd4] sm:$0xf]
      %v345 = vld [vmem:[%s1 + $0xd8] sm:$0xf]
      %v346 = vld [vmem:[%s1 + $0xdc] sm:$0xf]
      %v347 = vld [vmem:[%s1 + $0xe0] sm:$0xf]
      %v348 = vld [vmem:[%s1 + $0xe4] sm:$0xf]
      %v349 = vld [vmem:[%s1 + $0xe8] sm:$0xf]
      %v350 = vld [vmem:[%s1 + $0xec] sm:$0xf]
      %v351 = vld [vmem:[%s1 + $0xf0] sm:$0xf]
      %v352 = vld [vmem:[%s1 + $0xf4] sm:$0xf]
      %v353 = vld [vmem:[%s1 + $0xf8] sm:$0xf]
      %v354 = vld [vmem:[%s1 + $0xfc] sm:$0xf]
      %v355 = vld [vmem:[%s1 + $0x100] sm:$0xf]
      %v356 = vld [vmem:[%s1 + $0x104] sm:$0xf]
      %v357 = vld [vmem:[%s1 + $0x108] sm:$0xf]
      %v358 = vld [vmem:[%s1 + $0x10c] sm:$0xf]
      %v359 = vld [vmem:[%s1 + $0x110] sm:$0xf]
      %v360 = vld [vmem:[%s1 + $0x114] sm:$0xf]
      %v361 = vld [vmem:[%s1 + $0x118] sm:$0xf]
      %v362 = vld [vmem:[%s1 + $0x11c] sm:$0xf]
      %v363 = vld [vmem:[%s1 + $0x120] sm:$0xf]
      %v364 = vld [vmem:[%s1 + $0x124] sm:$0xf]
      %v365 = vld [vmem:[%s1 + $0x128] sm:$0xf]
      %v366 = vld [vmem:[%s1 + $0x12c] sm:$0xf]
      %v367 = vld [vmem:[%s1 + $0x130] sm:$0xf]
      %v368 = vld [vmem:[%s1 + $0x134] sm:$0xf]
      %v369 = vld [vmem:[%s1 + $0x138] sm:$0xf]
      %v370 = vld [vmem:[%s1 + $0x13c] sm:$0xf]
      %v371 = vld [vmem:[%s1 + $0x140] sm:$0xf]
      %v372 = vld [vmem:[%s1 + $0x144] sm:$0xf]
      %v373 = vld [vmem:[%s1 + $0x148] sm:$0xf]
      %v374 = vld [vmem:[%s1 + $0x14c] sm:$0xf]
      %v375 = vld [vmem:[%s1 + $0x150] sm:$0xf]
      %v376 = vld [vmem:[%s1 + $0x154] sm:$0xf]
      %v377 = vld [vmem:[%s1 + $0x158] sm:$0xf]
      %v378 = vld [vmem:[%s1 + $0x15c] sm:$0xf]
      %v379 = vld [vmem:[%s1 + $0x160] sm:$0xf]
      %v380 = vld [vmem:[%s1 + $0x164] sm:$0xf]
      %v381 = vld [vmem:[%s1 + $0x168] sm:$0xf]
      %v382 = vld [vmem:[%s1 + $0x16c] sm:$0xf]
      %v383 = vld [vmem:[%s1 + $0x170] sm:$0xf]
      %v384 = vld [vmem:[%s1 + $0x174] sm:$0xf]
      %v385 = vld [vmem:[%s1 + $0x178] sm:$0xf]
      %v386 = vld [vmem:[%s1 + $0x17c] sm:$0xf]
      %v387 = vld [vmem:[%s1 + $0x180] sm:$0xf]
      %v388 = vld [vmem:[%s1 + $0x184] sm:$0xf]
      %v389 = vld [vmem:[%s1 + $0x188] sm:$0xf]
      %v390 = vld [vmem:[%s1 + $0x18c] sm:$0xf]
      %v391 = vld [vmem:[%s1 + $0x190] sm:$0xf]
      %v392 = vld [vmem:[%s1 + $0x194] sm:$0xf]
      %v393 = vld [vmem:[%s1 + $0x198] sm:$0xf]
      %v394 = vld [vmem:[%s1 + $0x19c] sm:$0xf]
      %v395 = vld [vmem:[%s1 + $0x1a0] sm:$0xf]
      %v396 = vld [vmem:[%s1 + $0x1a4] sm:$0xf]
      %v397 = vld [vmem:[%s1 + $0x1a8] sm:$0xf]
      %v398 = vld [vmem:[%s1 + $0x1ac] sm:$0xf]
      %v399 = vld [vmem:[%s1 + $0x1b0] sm:$0xf]
      %v400 = vld [vmem:[%s1 + $0x1b4] sm:$0xf]
      %v401 = vld [vmem:[%s1 + $0x1b8] sm:$0xf]
      %v402 = vld [vmem:[%s1 + $0x1bc] sm:$0xf]
      %v403 = vld [vmem:[%s1 + $0x1c0] sm:$0xf]
      %v404 = vld [vmem:[%s1 + $0x1c4] sm:$0xf]
      %v405 = vld [vmem:[%s1 + $0x1c8] sm:$0xf]
      %v406 = vld [vmem:[%s1 + $0x1cc] sm:$0xf]
      %v407 = vld [vmem:[%s1 + $0x1d0] sm:$0xf]
      %v408 = vld [vmem:[%s1 + $0x1d4] sm:$0xf]
      %v409 = vld [vmem:[%s1 + $0x1d8] sm:$0xf]
      %v410 = vld [vmem:[%s1 + $0x1dc] sm:$0xf]
      %v411 = vld [vmem:[%s1 + $0x1e0] sm:$0xf]
      %v412 = vld [vmem:[%s1 + $0x1e4] sm:$0xf]
      %v413 = vld [vmem:[%s1 + $0x1e8] sm:$0xf]
      %v414 = vld [vmem:[%s1 + $0x1ec] sm:$0xf]
      %v415 = vld [vmem:[%s1 + $0x1f0] sm:$0xf]
      %v416 = vld [vmem:[%s1 + $0x1f4] sm:$0xf]
      %v417 = vld [vmem:[%s1 + $0x1f8] sm:$0xf]
      %v418 = vld [vmem:[%s1 + $0x1fc] sm:$0xf]
      %v419 = vld [vmem:[%s1 + $0x200] sm:$0xf]
      %v420 = vld [vmem:[%s1 + $0x204] sm:$0xf]
      %v421 = vld [vmem:[%s1 + $0x208] sm:$0xf]
      %v422 = vld [vmem:[%s1 + $0x20c] sm:$0xf]
      %v423 = vld [vmem:[%s1 + $0x210] sm:$0xf]
      %v424 = vld [vmem:[%s1 + $0x214] sm:$0xf]
      %v425 = vld [vmem:[%s1 + $0x218] sm:$0xf]
      %v426 = vld [vmem:[%s1 + $0x21c] sm:$0xf]
      %v427 = vld [vmem:[%s1 + $0x220] sm:$0xf]
      %v428 = vld [vmem:[%s1 + $0x224] sm:$0xf]
      %v429 = vld [vmem:[%s1 + $0x228] sm:$0xf]
      %v430 = vld [vmem:[%s1 + $0x22c] sm:$0xf]
      %v431 = vld [vmem:[%s1 + $0x230] sm:$0xf]
      %v432 = vld [vmem:[%s1 + $0x234] sm:$0xf]
      %v433 = vld [vmem:[%s1 + $0x238] sm:$0xf]
      %v434 = vld [vmem:[%s1 + $0x23c] sm:$0xf]
      %v579 = vunpack.c.l.b16 %v291
      %v580 = vunpack.c.l.b16 %v292
      %v581 = vunpack.c.l.b16 %v293
      %v582 = vunpack.c.l.b16 %v294
      %v583 = vunpack.c.l.b16 %v295
      %v584 = vunpack.c.l.b16 %v296
      %v585 = vunpack.c.l.b16 %v297
      %v586 = vunpack.c.l.b16 %v298
      %v587 = vunpack.c.l.b16 %v299
      %v588 = vunpack.c.l.b16 %v300
      %v589 = vunpack.c.l.b16 %v301
      %v590 = vunpack.c.l.b16 %v302
      %v591 = vunpack.c.l.b16 %v303
      %v592 = vunpack.c.l.b16 %v304
      %v593 = vunpack.c.l.b16 %v305
      %v594 = vunpack.c.l.b16 %v306
      %v595 = vunpack.c.l.b16 %v307
      %v596 = vunpack.c.l.b16 %v308
      %v597 = vunpack.c.l.b16 %v309
      %v598 = vunpack.c.l.b16 %v310
      %v599 = vunpack.c.l.b16 %v311
      %v600 = vunpack.c.l.b16 %v312
      %v601 = vunpack.c.l.b16 %v313
      %v602 = vunpack.c.l.b16 %v314
      %v603 = vunpack.c.l.b16 %v315
      %v604 = vunpack.c.l.b16 %v316
      %v605 = vunpack.c.l.b16 %v317
      %v606 = vunpack.c.l.b16 %v318
      %v607 = vunpack.c.l.b16 %v319
      %v608 = vunpack.c.l.b16 %v320
      %v609 = vunpack.c.l.b16 %v321
      %v610 = vunpack.c.l.b16 %v322
      %v611 = vunpack.c.l.b16 %v323
      %v612 = vunpack.c.l.b16 %v324
      %v613 = vunpack.c.l.b16 %v325
      %v614 = vunpack.c.l.b16 %v326
      %v615 = vunpack.c.l.b16 %v327
      %v616 = vunpack.c.l.b16 %v328
      %v617 = vunpack.c.l.b16 %v329
      %v618 = vunpack.c.l.b16 %v330
      %v619 = vunpack.c.l.b16 %v331
      %v620 = vunpack.c.l.b16 %v332
      %v621 = vunpack.c.l.b16 %v333
      %v622 = vunpack.c.l.b16 %v334
      %v623 = vunpack.c.l.b16 %v335
      %v624 = vunpack.c.l.b16 %v336
      %v625 = vunpack.c.l.b16 %v337
      %v626 = vunpack.c.l.b16 %v338
      %v627 = vunpack.c.l.b16 %v339
      %v628 = vunpack.c.l.b16 %v340
      %v629 = vunpack.c.l.b16 %v341
      %v630 = vunpack.c.l.b16 %v342
      %v631 = vunpack.c.l.b16 %v343
      %v632 = vunpack.c.l.b16 %v344
      %v633 = vunpack.c.l.b16 %v345
      %v634 = vunpack.c.l.b16 %v346
      %v635 = vunpack.c.l.b16 %v347
      %v636 = vunpack.c.l.b16 %v348
      %v637 = vunpack.c.l.b16 %v349
      %v638 = vunpack.c.l.b16 %v350
      %v639 = vunpack.c.l.b16 %v351
      %v640 = vunpack.c.l.b16 %v352
      %v641 = vunpack.c.l.b16 %v353
      %v642 = vunpack.c.l.b16 %v354
      %v643 = vunpack.c.l.b16 %v355
      %v644 = vunpack.c.l.b16 %v356
      %v645 = vunpack.c.l.b16 %v357
      %v646 = vunpack.c.l.b16 %v358
      %v647 = vunpack.c.l.b16 %v359
      %v648 = vunpack.c.l.b16 %v360
      %v649 = vunpack.c.l.b16 %v361
      %v650 = vunpack.c.l.b16 %v362
      %v651 = vunpack.c.l.b16 %v363
      %v652 = vunpack.c.l.b16 %v364
      %v653 = vunpack.c.l.b16 %v365
      %v654 = vunpack.c.l.b16 %v366
      %v655 = vunpack.c.l.b16 %v367
      %v656 = vunpack.c.l.b16 %v368
      %v657 = vunpack.c.l.b16 %v369
      %v658 = vunpack.c.l.b16 %v370
      %v659 = vunpack.c.l.b16 %v371
      %v660 = vunpack.c.l.b16 %v372
      %v661 = vunpack.c.l.b16 %v373
      %v662 = vunpack.c.l.b16 %v374
      %v663 = vunpack.c.l.b16 %v375
      %v664 = vunpack.c.l.b16 %v376
      %v665 = vunpack.c.l.b16 %v377
      %v666 = vunpack.c.l.b16 %v378
      %v667 = vunpack.c.l.b16 %v379
      %v668 = vunpack.c.l.b16 %v380
      %v669 = vunpack.c.l.b16 %v381
      %v670 = vunpack.c.l.b16 %v382
      %v671 = vunpack.c.l.b16 %v383
      %v672 = vunpack.c.l.b16 %v384
      %v673 = vunpack.c.l.b16 %v385
      %v674 = vunpack.c.l.b16 %v386
      %v675 = vunpack.c.l.b16 %v387
      %v676 = vunpack.c.l.b16 %v388
      %v677 = vunpack.c.l.b16 %v389
      %v678 = vunpack.c.l.b16 %v390
      %v679 = vunpack.c.l.b16 %v391
      %v680 = vunpack.c.l.b16 %v392
      %v681 = vunpack.c.l.b16 %v393
      %v682 = vunpack.c.l.b16 %v394
      %v683 = vunpack.c.l.b16 %v395
      %v684 = vunpack.c.l.b16 %v396
      %v685 = vunpack.c.l.b16 %v397
      %v686 = vunpack.c.l.b16 %v398
      %v687 = vunpack.c.l.b16 %v399
      %v688 = vunpack.c.l.b16 %v400
      %v689 = vunpack.c.l.b16 %v401
      %v690 = vunpack.c.l.b16 %v402
      %v691 = vunpack.c.l.b16 %v403
      %v692 = vunpack.c.l.b16 %v404
      %v693 = vunpack.c.l.b16 %v405
      %v694 = vunpack.c.l.b16 %v406
      %v695 = vunpack.c.l.b16 %v407
      %v696 = vunpack.c.l.b16 %v408
      %v697 = vunpack.c.l.b16 %v409
      %v698 = vunpack.c.l.b16 %v410
      %v699 = vunpack.c.l.b16 %v411
      %v700 = vunpack.c.l.b16 %v412
      %v701 = vunpack.c.l.b16 %v413
      %v702 = vunpack.c.l.b16 %v414
      %v703 = vunpack.c.l.b16 %v415
      %v704 = vunpack.c.l.b16 %v416
      %v705 = vunpack.c.l.b16 %v417
      %v706 = vunpack.c.l.b16 %v418
      %v707 = vunpack.c.l.b16 %v419
      %v708 = vunpack.c.l.b16 %v420
      %v709 = vunpack.c.l.b16 %v421
      %v710 = vunpack.c.l.b16 %v422
      %v711 = vunpack.c.l.b16 %v423
      %v712 = vunpack.c.l.b16 %v424
      %v713 = vunpack.c.l.b16 %v425
      %v714 = vunpack.c.l.b16 %v426
      %v715 = vunpack.c.l.b16 %v427
      %v716 = vunpack.c.l.b16 %v428
      %v717 = vunpack.c.l.b16 %v429
      %v718 = vunpack.c.l.b16 %v430
      %v719 = vunpack.c.l.b16 %v431
      %v720 = vunpack.c.l.b16 %v432
      %v721 = vunpack.c.l.b16 %v433
      %v722 = vunpack.c.l.b16 %v434
      %v723 = vpack.c.b16 %v580, %v579
      %v724 = vpack.c.b16 %v582, %v581
      %v725 = vpack.c.b16 %v584, %v583
      %v726 = vpack.c.b16 %v586, %v585
      %v727 = vpack.c.b16 %v588, %v587
      %v728 = vpack.c.b16 %v590, %v589
      %v729 = vpack.c.b16 %v592, %v591
      %v730 = vpack.c.b16 %v594, %v593
      %v731 = vpack.c.b16 %v596, %v595
      %v732 = vpack.c.b16 %v598, %v597
      %v733 = vpack.c.b16 %v600, %v599
      %v734 = vpack.c.b16 %v602, %v601
      %v735 = vpack.c.b16 %v604, %v603
      %v736 = vpack.c.b16 %v606, %v605
      %v737 = vpack.c.b16 %v608, %v607
      %v738 = vpack.c.b16 %v610, %v609
      %v739 = vpack.c.b16 %v612, %v611
      %v740 = vpack.c.b16 %v614, %v613
      %v741 = vpack.c.b16 %v616, %v615
      %v742 = vpack.c.b16 %v618, %v617
      %v743 = vpack.c.b16 %v620, %v619
      %v744 = vpack.c.b16 %v622, %v621
      %v745 = vpack.c.b16 %v624, %v623
      %v746 = vpack.c.b16 %v626, %v625
      %v747 = vpack.c.b16 %v628, %v627
      %v748 = vpack.c.b16 %v630, %v629
      %v749 = vpack.c.b16 %v632, %v631
      %v750 = vpack.c.b16 %v634, %v633
      %v751 = vpack.c.b16 %v636, %v635
      %v752 = vpack.c.b16 %v638, %v637
      %v753 = vpack.c.b16 %v640, %v639
      %v754 = vpack.c.b16 %v642, %v641
      %v755 = vpack.c.b16 %v644, %v643
      %v756 = vpack.c.b16 %v646, %v645
      %v757 = vpack.c.b16 %v648, %v647
      %v758 = vpack.c.b16 %v650, %v649
      %v759 = vpack.c.b16 %v652, %v651
      %v760 = vpack.c.b16 %v654, %v653
      %v761 = vpack.c.b16 %v656, %v655
      %v762 = vpack.c.b16 %v658, %v657
      %v763 = vpack.c.b16 %v660, %v659
      %v764 = vpack.c.b16 %v662, %v661
      %v765 = vpack.c.b16 %v664, %v663
      %v766 = vpack.c.b16 %v666, %v665
      %v767 = vpack.c.b16 %v668, %v667
      %v768 = vpack.c.b16 %v670, %v669
      %v769 = vpack.c.b16 %v672, %v671
      %v770 = vpack.c.b16 %v674, %v673
      %v771 = vpack.c.b16 %v676, %v675
      %v772 = vpack.c.b16 %v678, %v677
      %v773 = vpack.c.b16 %v680, %v679
      %v774 = vpack.c.b16 %v682, %v681
      %v775 = vpack.c.b16 %v684, %v683
      %v776 = vpack.c.b16 %v686, %v685
      %v777 = vpack.c.b16 %v688, %v687
      %v778 = vpack.c.b16 %v690, %v689
      %v779 = vpack.c.b16 %v692, %v691
      %v780 = vpack.c.b16 %v694, %v693
      %v781 = vpack.c.b16 %v696, %v695
      %v782 = vpack.c.b16 %v698, %v697
      %v783 = vpack.c.b16 %v700, %v699
      %v784 = vpack.c.b16 %v702, %v701
      %v785 = vpack.c.b16 %v704, %v703
      %v786 = vpack.c.b16 %v706, %v705
      %v787 = vpack.c.b16 %v708, %v707
      %v788 = vpack.c.b16 %v710, %v709
      %v789 = vpack.c.b16 %v712, %v711
      %v790 = vpack.c.b16 %v714, %v713
      %v791 = vpack.c.b16 %v716, %v715
      %v792 = vpack.c.b16 %v718, %v717
      %v793 = vpack.c.b16 %v720, %v719
      %v794 = vpack.c.b16 %v722, %v721
      %867 = vmatprep.subr.bf16.mxu0 0
      %868 = vmatpush1.bf16.msra.mxu0 %v723
      %869 = vmatprep.subr.bf16.mxu0 0
      %870 = vmatpush1.bf16.msra.mxu0 %v724
      %871 = vmatprep.subr.bf16.mxu0 0
      %872 = vmatpush1.bf16.msra.mxu0 %v725
      %873 = vmatprep.subr.bf16.mxu0 0
      %874 = vmatpush1.bf16.msra.mxu0 %v726
      %875 = vmatprep.subr.bf16.mxu0 0
      %876 = vmatpush1.bf16.msra.mxu0 %v727
      %877 = vmatprep.subr.bf16.mxu0 0
      %878 = vmatpush1.bf16.msra.mxu0 %v728
      %879 = vmatprep.subr.bf16.mxu0 0
      %880 = vmatpush1.bf16.msra.mxu0 %v729
      %881 = vmatprep.subr.bf16.mxu0 0
      %882 = vmatpush1.bf16.msra.mxu0 %v730
      %883 = vmatprep.subr.bf16.mxu0 0
      %884 = vmatpush1.bf16.msra.mxu0 %v731
      %885 = vmatprep.subr.bf16.mxu0 0
      %886 = vmatpush1.bf16.msra.mxu0 %v732
      %887 = vmatprep.subr.bf16.mxu0 0
      %888 = vmatpush1.bf16.msra.mxu0 %v733
      %889 = vmatprep.subr.bf16.mxu0 0
      %890 = vmatpush1.bf16.msra.mxu0 %v734
      %891 = vmatprep.subr.bf16.mxu0 0
      %892 = vmatpush1.bf16.msra.mxu0 %v735
      %893 = vmatprep.subr.bf16.mxu0 0
      %894 = vmatpush1.bf16.msra.mxu0 %v736
      %895 = vmatprep.subr.bf16.mxu0 0
      %896 = vmatpush1.bf16.msra.mxu0 %v737
      %897 = vmatprep.subr.bf16.mxu0 0
      %898 = vmatpush1.bf16.msra.mxu0 %v738
      %899 = vmatprep.mubr.bf16.mxu0 %v231
      %900 = vmatmul.mubr.bf16.gmra.mrb[0].mxu0 %v227
      %v901 = vpop.f32.mrb[0].mxu0
      %v902 = vadd.f32 0.0, %v901
      %v903 = vpop.f32.mrb[0].mxu0
      %v904 = vpop.f32.mrb[0].mxu0
      %v905 = vpop.f32.mrb[0].mxu0
      %906 = vdwg.mxu0
      %907 = vmatprep.subr.bf16.mxu0 0
      %908 = vmatpush1.bf16.msra.mxu0 %v739
      %909 = vmatprep.subr.bf16.mxu0 0
      %910 = vmatpush1.bf16.msra.mxu0 %v740
      %911 = vmatprep.subr.bf16.mxu0 0
      %912 = vmatpush1.bf16.msra.mxu0 %v741
      %913 = vmatprep.subr.bf16.mxu0 0
      %914 = vmatpush1.bf16.msra.mxu0 %v742
      %915 = vmatprep.subr.bf16.mxu0 0
      %916 = vmatpush1.bf16.msra.mxu0 %v743
      %917 = vmatprep.subr.bf16.mxu0 0
      %918 = vmatpush1.bf16.msra.mxu0 %v744
      %919 = vmatprep.subr.bf16.mxu0 0
      %920 = vmatpush1.bf16.msra.mxu0 %v745
      %921 = vmatprep.subr.bf16.mxu0 0
      %922 = vmatpush1.bf16.msra.mxu0 %v746
      %923 = vmatprep.subr.bf16.mxu0 0
      %924 = vmatpush1.bf16.msra.mxu0 %v747
      %925 = vmatprep.subr.bf16.mxu0 0
      %926 = vmatpush1.bf16.msra.mxu0 %v748
      %927 = vmatprep.subr.bf16.mxu0 0
      %928 = vmatpush1.bf16.msra.mxu0 %v749
      %929 = vmatprep.subr.bf16.mxu0 0
      %930 = vmatpush1.bf16.msra.mxu0 %v750
      %931 = vmatprep.subr.bf16.mxu0 0
      %932 = vmatpush1.bf16.msra.mxu0 %v751
      %933 = vmatprep.subr.bf16.mxu0 0
      %934 = vmatpush1.bf16.msra.mxu0 %v752
      %935 = vmatprep.subr.bf16.mxu0 0
      %936 = vmatpush1.bf16.msra.mxu0 %v753
      %937 = vmatprep.subr.bf16.mxu0 0
      %938 = vmatpush1.bf16.msra.mxu0 %v754
      %939 = vmatprep.mubr.bf16.mxu0 %v236
      %940 = vmatmul.mubr.bf16.gmra.mrb[0].mxu0 %v263
      %v941 = vpop.f32.mrb[0].mxu0
      %v942 = vadd.f32 %v902, %v941
      %v943 = vpop.f32.mrb[0].mxu0
      %v944 = vpop.f32.mrb[0].mxu0
      %v945 = vpop.f32.mrb[0].mxu0
      %946 = vdwg.mxu0
      %947 = vmatprep.subr.bf16.mxu0 0
      %948 = vmatpush1.bf16.msra.mxu0 %v755
      %949 = vmatprep.subr.bf16.mxu0 0
      %950 = vmatpush1.bf16.msra.mxu0 %v756
      %951 = vmatprep.subr.bf16.mxu0 0
      %952 = vmatpush1.bf16.msra.mxu0 %v757
      %953 = vmatprep.subr.bf16.mxu0 0
      %954 = vmatpush1.bf16.msra.mxu0 %v758
      %955 = vmatprep.subr.bf16.mxu0 0
      %956 = vmatpush1.bf16.msra.mxu0 %v759
      %957 = vmatprep.subr.bf16.mxu0 0
      %958 = vmatpush1.bf16.msra.mxu0 %v760
      %959 = vmatprep.subr.bf16.mxu0 0
      %960 = vmatpush1.bf16.msra.mxu0 %v761
      %961 = vmatprep.subr.bf16.mxu0 0
      %962 = vmatpush1.bf16.msra.mxu0 %v762
      %963 = vmatprep.subr.bf16.mxu0 0
      %964 = vmatpush1.bf16.msra.mxu0 %v763
      %965 = vmatprep.subr.bf16.mxu0 0
      %966 = vmatpush1.bf16.msra.mxu0 %v764
      %967 = vmatprep.subr.bf16.mxu0 0
      %968 = vmatpush1.bf16.msra.mxu0 %v765
      %969 = vmatprep.subr.bf16.mxu0 0
      %970 = vmatpush1.bf16.msra.mxu0 %v766
      %971 = vmatprep.subr.bf16.mxu0 0
      %972 = vmatpush1.bf16.msra.mxu0 %v767
      %973 = vmatprep.subr.bf16.mxu0 0
      %974 = vmatpush1.bf16.msra.mxu0 %v768
      %975 = vmatprep.subr.bf16.mxu0 0
      %976 = vmatpush1.bf16.msra.mxu0 %v769
      %977 = vmatprep.subr.bf16.mxu0 0
      %978 = vmatpush1.bf16.msra.mxu0 %v770
      %979 = vmatprep.mubr.bf16.mxu0 %v276
      %980 = vmatmul.mubr.bf16.gmra.mrb[0].mxu0 %v240
      %v981 = vpop.f32.mrb[0].mxu0
      %v982 = vadd.f32 %v942, %v981
      %v983 = vpop.f32.mrb[0].mxu0
      %v984 = vpop.f32.mrb[0].mxu0
      %v985 = vpop.f32.mrb[0].mxu0
      %986 = vdwg.mxu0
      %987 = vmatprep.subr.bf16.mxu0 0
      %988 = vmatpush1.bf16.msra.mxu0 %v771
      %989 = vmatprep.subr.bf16.mxu0 0
      %990 = vmatpush1.bf16.msra.mxu0 %v772
      %991 = vmatprep.subr.bf16.mxu0 0
      %992 = vmatpush1.bf16.msra.mxu0 %v773
      %993 = vmatprep.subr.bf16.mxu0 0
      %994 = vmatpush1.bf16.msra.mxu0 %v774
      %995 = vmatprep.subr.bf16.mxu0 0
      %996 = vmatpush1.bf16.msra.mxu0 %v775
      %997 = vmatprep.subr.bf16.mxu0 0
      %998 = vmatpush1.bf16.msra.mxu0 %v776
      %999 = vmatprep.subr.bf16.mxu0 0
      %1000 = vmatpush1.bf16.msra.mxu0 %v777
      %1001 = vmatprep.subr.bf16.mxu0 0
      %1002 = vmatpush1.bf16.msra.mxu0 %v778
      %1003 = vmatprep.subr.bf16.mxu0 0
      %1004 = vmatpush1.bf16.msra.mxu0 %v779
      %1005 = vmatprep.subr.bf16.mxu0 0
      %1006 = vmatpush1.bf16.msra.mxu0 %v780
      %1007 = vmatprep.subr.bf16.mxu0 0
      %1008 = vmatpush1.bf16.msra.mxu0 %v781
      %1009 = vmatprep.subr.bf16.mxu0 0
      %1010 = vmatpush1.bf16.msra.mxu0 %v782
      %1011 = vmatprep.subr.bf16.mxu0 0
      %1012 = vmatpush1.bf16.msra.mxu0 %v783
      %1013 = vmatprep.subr.bf16.mxu0 0
      %1014 = vmatpush1.bf16.msra.mxu0 %v784
      %1015 = vmatprep.subr.bf16.mxu0 0
      %1016 = vmatpush1.bf16.msra.mxu0 %v785
      %1017 = vmatprep.subr.bf16.mxu0 0
      %1018 = vmatpush1.bf16.msra.mxu0 %v786
      %1019 = vmatprep.mubr.bf16.mxu0 %v250
      %1020 = vmatmul.mubr.bf16.gmra.mrb[0].mxu0 %v246
      %v1021 = vpop.f32.mrb[0].mxu0
      %v1022 = vadd.f32 %v982, %v1021
      %v1023 = vpop.f32.mrb[0].mxu0
      %v1024 = vpop.f32.mrb[0].mxu0
      %v1025 = vpop.f32.mrb[0].mxu0
      %1026 = vdwg.mxu0
      %1027 = vmatprep.subr.bf16.mxu0 0
      %1028 = vmatpush1.bf16.msra.mxu0 %v787
      %1029 = vmatprep.subr.bf16.mxu0 0
      %1030 = vmatpush1.bf16.msra.mxu0 %v788
      %1031 = vmatprep.subr.bf16.mxu0 0
      %1032 = vmatpush1.bf16.msra.mxu0 %v789
      %1033 = vmatprep.subr.bf16.mxu0 0
      %1034 = vmatpush1.bf16.msra.mxu0 %v790
      %1035 = vmatprep.subr.bf16.mxu0 0
      %1036 = vmatpush1.bf16.msra.mxu0 %v791
      %1037 = vmatprep.subr.bf16.mxu0 0
      %1038 = vmatpush1.bf16.msra.mxu0 %v792
      %1039 = vmatprep.subr.bf16.mxu0 0
      %1040 = vmatpush1.bf16.msra.mxu0 %v793
      %1041 = vmatprep.subr.bf16.mxu0 0
      %1042 = vmatpush1.bf16.msra.mxu0 %v794
      %1043 = vmatprep.subr.bf16.mxu0 0
      %1044 = vmatpush1.bf16.msra.mxu0 0
      %1045 = vmatprep.subr.bf16.mxu0 0
      %1046 = vmatpush1.bf16.msra.mxu0 0
      %1047 = vmatprep.subr.bf16.mxu0 0
      %1048 = vmatpush1.bf16.msra.mxu0 0
      %1049 = vmatprep.subr.bf16.mxu0 0
      %1050 = vmatpush1.bf16.msra.mxu0 0
      %1051 = vmatprep.subr.bf16.mxu0 0
      %1052 = vmatpush1.bf16.msra.mxu0 0
      %1053 = vmatprep.subr.bf16.mxu0 0
      %1054 = vmatpush1.bf16.msra.mxu0 0
      %1055 = vmatprep.subr.bf16.mxu0 0
      %1056 = vmatpush1.bf16.msra.mxu0 0
      %1057 = vmatprep.subr.bf16.mxu0 0
      %1058 = vmatpush1.bf16.msra.mxu0 0
      %1059 = vmatprep.mubr.bf16.mxu0 0
      %1060 = vmatmul.mubr.bf16.gmra.mrb[0].mxu0 %v289
      %v1061 = vpop.f32.mrb[0].mxu0
      %v1062 = vadd.f32 %v1022, %v1061
      %v1063 = vpop.f32.mrb[0].mxu0
      %v1064 = vpop.f32.mrb[0].mxu0
      %v1065 = vpop.f32.mrb[0].mxu0
      %1066 = vdwg.mxu0
      %v1067 = vld [vmem:[%s2] sm:$0x1]
      %v1069 = vlaneseq
      %v1070 = vshrl.u32 %v1069, 7
      %v1071 = vsub.s32 0, %v1070
      %v1072 = vrot.slane %v1067, %v1071
      %v1074 = vmul.f32 %v1062, %v1072
      %v1075 = vld [vmem:[%s3] sm:$0x1]
      %v1077 = vlaneseq
      %v1078 = vshrl.u32 %v1077, 7
      %v1079 = vsub.s32 0, %v1078
      %v1080 = vrot.slane %v1075, %v1079
      %v1082 = vadd.f32 %v1074, %v1080
      %v1083 = vmax.f32 %v1082, 0.0
      %v1084 = vpack.c.bf16 %v1083, %v1083
      %1085 = vst [vmem:[%s222] sm:$0xf] %v1084
      %p1086 = scmp.lt.s32.totalorder %s19, 1
      %s1087 = scalar_select %p1086, %s19, 1
      %p1088 = scmp.lt.s32.totalorder %s20, 7
      %s1089 = scalar_select %p1088, %s20, 7
      %s1090 = smul.addr %s1087, 8
      %s1091 = sadd.s32 %s1089, %s1090
      %s1092 = smul.addr %s1091, 4
      %s1093 = scalar_lea.vmem %s4, %s1092
      // Predicated region
      $region37: #{bottleneck_forward.4} parent=35 // pred_check
        %p1094 = pneg %p136
      $region38: #{bottleneck_forward.4} parent=35 // pred_check_branch
        %1096 = sbr.rel (%p1094) target = $region40
      $region39: #{bottleneck_forward.4} parent=35 // pred_region
        _
      $region40: #{bottleneck_forward.4} parent=35 // pred_fallthru
        _
    $region36: #{bottleneck_forward.4} parent=5 // pred_fallthru
      _
    %p1097 = scmp.le.s32.totalorder 2, %s10
    // Predicated region
    $region41: #{bottleneck_forward.4} parent=5 // pred_check
      %p1098 = pneg %p1097
    $region42: #{bottleneck_forward.4} parent=5 // pred_check_branch
      %1100 = sbr.rel (%p1098) target = $region44
    $region43: #{bottleneck_forward.4} parent=5 // pred_region
      %s1101 = ssub.s32 %s10, 2
      // Predicated region
      $region45: #{bottleneck_forward.4} parent=43 // pred_check
        %p1102 = pneg %p142
      $region46: #{bottleneck_forward.4} parent=43 // pred_check_branch
        %1104 = sbr.rel (%p1102) target = $region48
      $region47: #{bottleneck_forward.4} parent=43 // pred_region
        %p1105 = scmp.lt.s32.totalorder %s21, 1
        %s1106 = scalar_select %p1105, %s21, 1
        %p1107 = scmp.lt.s32.totalorder %s22, 7
        %s1108 = scalar_select %p1107, %s22, 7
        %s1109 = smul.addr %s1106, 8
        %s1110 = sadd.s32 %s1108, %s1109
        %s1111 = smul.addr %s1110, 4
        %s1112 = scalar_lea.vmem %s4, %s1111
      $region48: #{bottleneck_forward.4} parent=43 // pred_fallthru
        _
    $region44: #{bottleneck_forward.4} parent=5 // pred_fallthru
      _
  $region6: #{bottleneck_forward.4} parent=0 // loop_footer
    %s14 = sadd.s32 1, %s10
  $region7: #{bottleneck_forward.4} parent=0 // loop_footer_branch
    %9 = sbr.rel target = $region3
  $region8: #{bottleneck_forward.4} parent=0 // loop_exit
    _

// kernel: bottleneck_forward.5
$region0: #{bottleneck_forward.5}
  #allocation0 [shape = 'u32[]', space=smem, size = 0x4, offset = 0x4, fixed_abs, tag = 'smem constant byte address 0x4 - core index']
  #allocation1 [shape = 'u32[144,128]{1,0:T(1,128)}', space=vmem, size = 0x12000, scoped, tag = 'internal scratch']
  #allocation2 [shape = 'f32[128,128]{1,0:T(8,128)}', space=vmem, size = 0x10000, scoped, tag = 'scratch operand']
  %s0 = inlined_call_operand.vmem [shape: bf16[128,128], index: 0, kind: input, shape index: {}]
  %s1 = inlined_call_operand.vmem [shape: bf16[128,128], index: 1, kind: input, shape index: {}]
  %s2 = inlined_call_operand.vmem [shape: f32[1,128], index: 2, kind: input, shape index: {}]
  %s3 = inlined_call_operand.vmem [shape: f32[1,128], index: 3, kind: input, shape index: {}]
  %s4 = inlined_call_operand.vmem [shape: bf16[128,128], index: 4, kind: input, shape index: {}]
  %s5 = inlined_call_operand.vmem [shape: bf16[128,128], index: 5, kind: input, shape index: {}]
  %s6 = inlined_call_operand.vmem [shape: f32[1,128], index: 6, kind: input, shape index: {}]
  %s7 = inlined_call_operand.vmem [shape: f32[1,128], index: 7, kind: input, shape index: {}]
  %s8 = inlined_call_operand.hbm [shape: f32[128,128], index: 8, kind: output, shape index: {}]
  %s9 = sld [smem:[#allocation0]]
  $region50: #{bottleneck_forward.5} parent=0
    _
  %s11 = ssub.s32 1, %s9
  %s12 = scalar_select 0, %s11, %s9
  $region1: #{bottleneck_forward.5} parent=0
    #allocation3 [shape = 'u8[65536]{0}', space=vmem, size = 0x10000, scoped, tag = 'output window, operand 0, single buffered']
    #allocation4 [shape = 's32[1]{0}', space=sflag, size = 0x4, scoped, tag = 'scoped memory for bottleneck_forward.5']
    %13 = vsyncpa [#allocation4], 0
    // Predicated region
    $region2: #{bottleneck_forward.5} parent=1 // pred_check
      _
    $region3: #{bottleneck_forward.5} parent=1 // pred_check_branch
      %15 = sbr.rel (0) target = $region5
    $region4: #{bottleneck_forward.5} parent=1 // pred_region
      _
    $region5: #{bottleneck_forward.5} parent=1 // pred_fallthru
      _
    // Predicated region
    $region6: #{bottleneck_forward.5} parent=1 // pred_check
      _
    $region7: #{bottleneck_forward.5} parent=1 // pred_check_branch
      %17 = sbr.rel (0) target = $region9
    $region8: #{bottleneck_forward.5} parent=1 // pred_region
      _
    $region9: #{bottleneck_forward.5} parent=1 // pred_fallthru
      _
    // Predicated region
    $region10: #{bottleneck_forward.5} parent=1 // pred_check
      _
    $region11: #{bottleneck_forward.5} parent=1 // pred_check_branch
      %19 = sbr.rel (0) target = $region13
    $region12: #{bottleneck_forward.5} parent=1 // pred_region
      _
    $region13: #{bottleneck_forward.5} parent=1 // pred_fallthru
      _
    // Predicated region
    $region14: #{bottleneck_forward.5} parent=1 // pred_check
      _
    $region15: #{bottleneck_forward.5} parent=1 // pred_check_branch
      %21 = sbr.rel (0) target = $region17
    $region16: #{bottleneck_forward.5} parent=1 // pred_region
      _
    $region17: #{bottleneck_forward.5} parent=1 // pred_fallthru
      _
    // Predicated region
    $region18: #{bottleneck_forward.5} parent=1 // pred_check
      _
    $region19: #{bottleneck_forward.5} parent=1 // pred_check_branch
      %23 = sbr.rel (0) target = $region21
    $region20: #{bottleneck_forward.5} parent=1 // pred_region
      _
    $region21: #{bottleneck_forward.5} parent=1 // pred_fallthru
      _
    // Predicated region
    $region22: #{bottleneck_forward.5} parent=1 // pred_check
      _
    $region23: #{bottleneck_forward.5} parent=1 // pred_check_branch
      %25 = sbr.rel (0) target = $region25
    $region24: #{bottleneck_forward.5} parent=1 // pred_region
      _
    $region25: #{bottleneck_forward.5} parent=1 // pred_fallthru
      _
    // Predicated region
    $region26: #{bottleneck_forward.5} parent=1 // pred_check
      _
    $region27: #{bottleneck_forward.5} parent=1 // pred_check_branch
      %27 = sbr.rel (0) target = $region29
    $region28: #{bottleneck_forward.5} parent=1 // pred_region
      _
    $region29: #{bottleneck_forward.5} parent=1 // pred_fallthru
      _
    // Predicated region
    $region30: #{bottleneck_forward.5} parent=1 // pred_check
      _
    $region31: #{bottleneck_forward.5} parent=1 // pred_check_branch
      %29 = sbr.rel (0) target = $region33
    $region32: #{bottleneck_forward.5} parent=1 // pred_region
      _
    $region33: #{bottleneck_forward.5} parent=1 // pred_fallthru
      _
    %p31 = scmp.eq.s32.totalorder 0, 0
    // Predicated region
    $region34: #{bottleneck_forward.5} parent=1 // pred_check
      %p32 = pneg %p31
    $region35: #{bottleneck_forward.5} parent=1 // pred_check_branch
      %34 = sbr.rel (%p32) target = $region37
    $region36: #{bottleneck_forward.5} parent=1 // pred_region
      %35 = vst [vmem:[#allocation2] sm:$0xff] 0.0
      %36 = vst [vmem:[#allocation2 + $0x8] sm:$0xff] 0.0
      %37 = vst [vmem:[#allocation2 + $0x10] sm:$0xff] 0.0
      %38 = vst [vmem:[#allocation2 + $0x18] sm:$0xff] 0.0
      %39 = vst [vmem:[#allocation2 + $0x20] sm:$0xff] 0.0
      %40 = vst [vmem:[#allocation2 + $0x28] sm:$0xff] 0.0
      %41 = vst [vmem:[#allocation2 + $0x30] sm:$0xff] 0.0
      %42 = vst [vmem:[#allocation2 + $0x38] sm:$0xff] 0.0
      %43 = vst [vmem:[#allocation2 + $0x40] sm:$0xff] 0.0
      %44 = vst [vmem:[#allocation2 + $0x48] sm:$0xff] 0.0
      %45 = vst [vmem:[#allocation2 + $0x50] sm:$0xff] 0.0
      %46 = vst [vmem:[#allocation2 + $0x58] sm:$0xff] 0.0
      %47 = vst [vmem:[#allocation2 + $0x60] sm:$0xff] 0.0
      %48 = vst [vmem:[#allocation2 + $0x68] sm:$0xff] 0.0
      %49 = vst [vmem:[#allocation2 + $0x70] sm:$0xff] 0.0
      %50 = vst [vmem:[#allocation2 + $0x78] sm:$0xff] 0.0
    $region37: #{bottleneck_forward.5} parent=1 // pred_fallthru
      _
    %v51 = vld [vmem:[#allocation2] sm:$0xff]
    %v52 = vld [vmem:[#allocation2 + $0x8] sm:$0xff]
    %v53 = vld [vmem:[#allocation2 + $0x10] sm:$0xff]
    %v54 = vld [vmem:[#allocation2 + $0x18] sm:$0xff]
    %v55 = vld [vmem:[#allocation2 + $0x20] sm:$0xff]
    %v56 = vld [vmem:[#allocation2 + $0x28] sm:$0xff]
    %v57 = vld [vmem:[#allocation2 + $0x30] sm:$0xff]
    %v58 = vld [vmem:[#allocation2 + $0x38] sm:$0xff]
    %v59 = vld [vmem:[#allocation2 + $0x40] sm:$0xff]
    %v60 = vld [vmem:[#allocation2 + $0x48] sm:$0xff]
    %v61 = vld [vmem:[#allocation2 + $0x50] sm:$0xff]
    %v62 = vld [vmem:[#allocation2 + $0x58] sm:$0xff]
    %v63 = vld [vmem:[#allocation2 + $0x60] sm:$0xff]
    %v64 = vld [vmem:[#allocation2 + $0x68] sm:$0xff]
    %v65 = vld [vmem:[#allocation2 + $0x70] sm:$0xff]
    %v66 = vld [vmem:[#allocation2 + $0x78] sm:$0xff]
    %v67 = vld [vmem:[%s0] sm:$0xf]
    %v68 = vld [vmem:[%s0 + $0x4] sm:$0xf]
    %v69 = vld [vmem:[%s0 + $0x8] sm:$0xf]
    %v70 = vld [vmem:[%s0 + $0xc] sm:$0xf]
    %v71 = vld [vmem:[%s0 + $0x10] sm:$0xf]
    %v72 = vld [vmem:[%s0 + $0x14] sm:$0xf]
    %v73 = vld [vmem:[%s0 + $0x18] sm:$0xf]
    %v74 = vld [vmem:[%s0 + $0x1c] sm:$0xf]
    %v75 = vld [vmem:[%s0 + $0x20] sm:$0xf]
    %v76 = vld [vmem:[%s0 + $0x24] sm:$0xf]
    %v77 = vld [vmem:[%s0 + $0x28] sm:$0xf]
    %v78 = vld [vmem:[%s0 + $0x2c] sm:$0xf]
    %v79 = vld [vmem:[%s0 + $0x30] sm:$0xf]
    %v80 = vld [vmem:[%s0 + $0x34] sm:$0xf]
    %v81 = vld [vmem:[%s0 + $0x38] sm:$0xf]
    %v82 = vld [vmem:[%s0 + $0x3c] sm:$0xf]
    %v83 = vld [vmem:[%s1] sm:$0xf]
    %v84 = vld [vmem:[%s1 + $0x4] sm:$0xf]
    %v85 = vld [vmem:[%s1 + $0x8] sm:$0xf]
    %v86 = vld [vmem:[%s1 + $0xc] sm:$0xf]
    %v87 = vld [vmem:[%s1 + $0x10] sm:$0xf]
    %v88 = vld [vmem:[%s1 + $0x14] sm:$0xf]
    %v89 = vld [vmem:[%s1 + $0x18] sm:$0xf]
    %v90 = vld [vmem:[%s1 + $0x1c] sm:$0xf]
    %v91 = vld [vmem:[%s1 + $0x20] sm:$0xf]
    %v92 = vld [vmem:[%s1 + $0x24] sm:$0xf]
    %v93 = vld [vmem:[%s1 + $0x28] sm:$0xf]
    %v94 = vld [vmem:[%s1 + $0x2c] sm:$0xf]
    %v95 = vld [vmem:[%s1 + $0x30] sm:$0xf]
    %v96 = vld [vmem:[%s1 + $0x34] sm:$0xf]
    %v97 = vld [vmem:[%s1 + $0x38] sm:$0xf]
    %v98 = vld [vmem:[%s1 + $0x3c] sm:$0xf]
    %v115 = vunpack.c.l.b16 %v67
    %v116 = vunpack.c.l.b16 %v68
    %v117 = vunpack.c.l.b16 %v69
    %v118 = vunpack.c.l.b16 %v70
    %v119 = vunpack.c.l.b16 %v71
    %v120 = vunpack.c.l.b16 %v72
    %v121 = vunpack.c.l.b16 %v73
    %v122 = vunpack.c.l.b16 %v74
    %v123 = vunpack.c.l.b16 %v75
    %v124 = vunpack.c.l.b16 %v76
    %v125 = vunpack.c.l.b16 %v77
    %v126 = vunpack.c.l.b16 %v78
    %v127 = vunpack.c.l.b16 %v79
    %v128 = vunpack.c.l.b16 %v80
    %v129 = vunpack.c.l.b16 %v81
    %v130 = vunpack.c.l.b16 %v82
    %v131 = vpack.c.b16 %v116, %v115
    %v132 = vpack.c.b16 %v118, %v117
    %v133 = vpack.c.b16 %v120, %v119
    %v134 = vpack.c.b16 %v122, %v121
    %v135 = vpack.c.b16 %v124, %v123
    %v136 = vpack.c.b16 %v126, %v125
    %v137 = vpack.c.b16 %v128, %v127
    %v138 = vpack.c.b16 %v130, %v129
    %v163 = vunpack.c.l.b16 %v83
    %v164 = vunpack.c.l.b16 %v84
    %v165 = vunpack.c.l.b16 %v85
    %v166 = vunpack.c.l.b16 %v86
    %v167 = vunpack.c.l.b16 %v87
    %v168 = vunpack.c.l.b16 %v88
    %v169 = vunpack.c.l.b16 %v89
    %v170 = vunpack.c.l.b16 %v90
    %v171 = vunpack.c.l.b16 %v91
    %v172 = vunpack.c.l.b16 %v92
    %v173 = vunpack.c.l.b16 %v93
    %v174 = vunpack.c.l.b16 %v94
    %v175 = vunpack.c.l.b16 %v95
    %v176 = vunpack.c.l.b16 %v96
    %v177 = vunpack.c.l.b16 %v97
    %v178 = vunpack.c.l.b16 %v98
    %v179 = vpack.c.b16 %v164, %v163
    %v180 = vpack.c.b16 %v166, %v165
    %v181 = vpack.c.b16 %v168, %v167
    %v182 = vpack.c.b16 %v170, %v169
    %v183 = vpack.c.b16 %v172, %v171
    %v184 = vpack.c.b16 %v174, %v173
    %v185 = vpack.c.b16 %v176, %v175
    %v186 = vpack.c.b16 %v178, %v177
    %195 = vmatprep.subr.bf16.mxu0 0
    %196 = vmatpush1.bf16.msra.mxu0 %v179
    %197 = vmatprep.subr.bf16.mxu0 0
    %198 = vmatpush1.bf16.msra.mxu0 %v180
    %199 = vmatprep.subr.bf16.mxu0 0
    %200 = vmatpush1.bf16.msra.mxu0 %v181
    %201 = vmatprep.subr.bf16.mxu0 0
    %202 = vmatpush1.bf16.msra.mxu0 %v182
    %203 = vmatprep.subr.bf16.mxu0 0
    %204 = vmatpush1.bf16.msra.mxu0 %v183
    %205 = vmatprep.subr.bf16.mxu0 0
    %206 = vmatpush1.bf16.msra.mxu0 %v184
    %207 = vmatprep.subr.bf16.mxu0 0
    %208 = vmatpush1.bf16.msra.mxu0 %v185
    %209 = vmatprep.subr.bf16.mxu0 0
    %210 = vmatpush1.bf16.msra.mxu0 %v186
    %211 = vmatprep.subr.bf16.mxu0 0
    %212 = vmatpush1.bf16.msra.mxu0 0
    %213 = vmatprep.subr.bf16.mxu0 0
    %214 = vmatpush1.bf16.msra.mxu0 0
    %215 = vmatprep.subr.bf16.mxu0 0
    %216 = vmatpush1.bf16.msra.mxu0 0
    %217 = vmatprep.subr.bf16.mxu0 0
    %218 = vmatpush1.bf16.msra.mxu0 0
    %219 = vmatprep.subr.bf16.mxu0 0
    %220 = vmatpush1.bf16.msra.mxu0 0
    %221 = vmatprep.subr.bf16.mxu0 0
    %222 = vmatpush1.bf16.msra.mxu0 0
    %223 = vmatprep.subr.bf16.mxu0 0
    %224 = vmatpush1.bf16.msra.mxu0 0
    %225 = vmatprep.subr.bf16.mxu0 0
    %226 = vmatpush1.bf16.msra.mxu0 0
    %227 = vmatprep.mubr.bf16.mxu0 0
    %228 = vmatmul.mubr.bf16.gmra.mrb[0].mxu0 %v131
    %v229 = vpop.f32.mrb[0].mxu0
    %v230 = vadd.f32 0.0, %v229
    %v231 = vpop.f32.mrb[0].mxu0
    %v232 = vpop.f32.mrb[0].mxu0
    %v233 = vadd.f32 0.0, %v232
    %v234 = vpop.f32.mrb[0].mxu0
    %235 = vmatprep.mubr.bf16.mxu0 0
    %236 = vmatmul.mubr.bf16.gmra.mrb[0].mxu0 %v132
    %v237 = vpop.f32.mrb[0].mxu0
    %v238 = vadd.f32 0.0, %v237
    %v239 = vpop.f32.mrb[0].mxu0
    %v240 = vpop.f32.mrb[0].mxu0
    %v241 = vadd.f32 0.0, %v240
    %v242 = vpop.f32.mrb[0].mxu0
    %243 = vmatprep.mubr.bf16.mxu0 0
    %244 = vmatmul.mubr.bf16.gmra.mrb[0].mxu0 %v133
    %v245 = vpop.f32.mrb[0].mxu0
    %v246 = vadd.f32 0.0, %v245
    %v247 = vpop.f32.mrb[0].mxu0
    %v248 = vpop.f32.mrb[0].mxu0
    %v249 = vadd.f32 0.0, %v248
    %v250 = vpop.f32.mrb[0].mxu0
    %251 = vmatprep.mubr.bf16.mxu0 0
    %252 = vmatmul.mubr.bf16.gmra.mrb[0].mxu0 %v134
    %v253 = vpop.f32.mrb[0].mxu0
    %v254 = vadd.f32 0.0, %v253
    %v255 = vpop.f32.mrb[0].mxu0
    %v256 = vpop.f32.mrb[0].mxu0
    %v257 = vadd.f32 0.0, %v256
    %v258 = vpop.f32.mrb[0].mxu0
    %259 = vmatprep.mubr.bf16.mxu0 0
    %260 = vmatmul.mubr.bf16.gmra.mrb[0].mxu0 %v135
    %v261 = vpop.f32.mrb[0].mxu0
    %v262 = vadd.f32 0.0, %v261
    %v263 = vpop.f32.mrb[0].mxu0
    %v264 = vpop.f32.mrb[0].mxu0
    %v265 = vadd.f32 0.0, %v264
    %v266 = vpop.f32.mrb[0].mxu0
    %267 = vmatprep.mubr.bf16.mxu0 0
    %268 = vmatmul.mubr.bf16.gmra.mrb[0].mxu0 %v136
    %v269 = vpop.f32.mrb[0].mxu0
    %v270 = vadd.f32 0.0, %v269
    %v271 = vpop.f32.mrb[0].mxu0
    %v272 = vpop.f32.mrb[0].mxu0
    %v273 = vadd.f32 0.0, %v272
    %v274 = vpop.f32.mrb[0].mxu0
    %275 = vmatprep.mubr.bf16.mxu0 0
    %276 = vmatmul.mubr.bf16.gmra.mrb[0].mxu0 %v137
    %v277 = vpop.f32.mrb[0].mxu0
    %v278 = vadd.f32 0.0, %v277
    %v279 = vpop.f32.mrb[0].mxu0
    %v280 = vpop.f32.mrb[0].mxu0
    %v281 = vadd.f32 0.0, %v280
    %v282 = vpop.f32.mrb[0].mxu0
    %283 = vmatprep.mubr.bf16.mxu0 0
    %284 = vmatmul.mubr.bf16.gmra.mrb[0].mxu0 %v138
    %v285 = vpop.f32.mrb[0].mxu0
    %v286 = vadd.f32 0.0, %v285
    %v287 = vpop.f32.mrb[0].mxu0
    %v288 = vpop.f32.mrb[0].mxu0
    %v289 = vadd.f32 0.0, %v288
    %v290 = vpop.f32.mrb[0].mxu0
    %291 = vdwg.mxu0
    %v292 = vadd.f32 %v51, %v230
    %v293 = vadd.f32 %v52, %v233
    %v294 = vadd.f32 %v53, %v238
    %v295 = vadd.f32 %v54, %v241
    %v296 = vadd.f32 %v55, %v246
    %v297 = vadd.f32 %v56, %v249
    %v298 = vadd.f32 %v57, %v254
    %v299 = vadd.f32 %v58, %v257
    %v300 = vadd.f32 %v59, %v262
    %v301 = vadd.f32 %v60, %v265
    %v302 = vadd.f32 %v61, %v270
    %v303 = vadd.f32 %v62, %v273
    %v304 = vadd.f32 %v63, %v278
    %v305 = vadd.f32 %v64, %v281
    %v306 = vadd.f32 %v65, %v286
    %v307 = vadd.f32 %v66, %v289
    %308 = vst [vmem:[#allocation2] sm:$0xff] %v292
    %309 = vst [vmem:[#allocation2 + $0x8] sm:$0xff] %v293
    %310 = vst [vmem:[#allocation2 + $0x10] sm:$0xff] %v294
    %311 = vst [vmem:[#allocation2 + $0x18] sm:$0xff] %v295
    %312 = vst [vmem:[#allocation2 + $0x20] sm:$0xff] %v296
    %313 = vst [vmem:[#allocation2 + $0x28] sm:$0xff] %v297
    %314 = vst [vmem:[#allocation2 + $0x30] sm:$0xff] %v298
    %315 = vst [vmem:[#allocation2 + $0x38] sm:$0xff] %v299
    %316 = vst [vmem:[#allocation2 + $0x40] sm:$0xff] %v300
    %317 = vst [vmem:[#allocation2 + $0x48] sm:$0xff] %v301
    %318 = vst [vmem:[#allocation2 + $0x50] sm:$0xff] %v302
    %319 = vst [vmem:[#allocation2 + $0x58] sm:$0xff] %v303
    %320 = vst [vmem:[#allocation2 + $0x60] sm:$0xff] %v304
    %321 = vst [vmem:[#allocation2 + $0x68] sm:$0xff] %v305
    %322 = vst [vmem:[#allocation2 + $0x70] sm:$0xff] %v306
    %323 = vst [vmem:[#allocation2 + $0x78] sm:$0xff] %v307
    // Predicated region
    $region38: #{bottleneck_forward.5} parent=1 // pred_check
      %p324 = pneg %p31
    $region39: #{bottleneck_forward.5} parent=1 // pred_check_branch
      %326 = sbr.rel (%p324) target = $region41
    $region40: #{bottleneck_forward.5} parent=1 // pred_region
      %v327 = vld [vmem:[%s4] sm:$0xf]
      %v328 = vld [vmem:[%s4 + $0x4] sm:$0xf]
      %v329 = vld [vmem:[%s4 + $0x8] sm:$0xf]
      %v330 = vld [vmem:[%s4 + $0xc] sm:$0xf]
      %v331 = vld [vmem:[%s4 + $0x10] sm:$0xf]
      %v332 = vld [vmem:[%s4 + $0x14] sm:$0xf]
      %v333 = vld [vmem:[%s4 + $0x18] sm:$0xf]
      %v334 = vld [vmem:[%s4 + $0x1c] sm:$0xf]
      %v335 = vld [vmem:[%s4 + $0x20] sm:$0xf]
      %v336 = vld [vmem:[%s4 + $0x24] sm:$0xf]
      %v337 = vld [vmem:[%s4 + $0x28] sm:$0xf]
      %v338 = vld [vmem:[%s4 + $0x2c] sm:$0xf]
      %v339 = vld [vmem:[%s4 + $0x30] sm:$0xf]
      %v340 = vld [vmem:[%s4 + $0x34] sm:$0xf]
      %v341 = vld [vmem:[%s4 + $0x38] sm:$0xf]
      %v342 = vld [vmem:[%s4 + $0x3c] sm:$0xf]
      %v343 = vld [vmem:[%s5] sm:$0xf]
      %v344 = vld [vmem:[%s5 + $0x4] sm:$0xf]
      %v345 = vld [vmem:[%s5 + $0x8] sm:$0xf]
      %v346 = vld [vmem:[%s5 + $0xc] sm:$0xf]
      %v347 = vld [vmem:[%s5 + $0x10] sm:$0xf]
      %v348 = vld [vmem:[%s5 + $0x14] sm:$0xf]
      %v349 = vld [vmem:[%s5 + $0x18] sm:$0xf]
      %v350 = vld [vmem:[%s5 + $0x1c] sm:$0xf]
      %v351 = vld [vmem:[%s5 + $0x20] sm:$0xf]
      %v352 = vld [vmem:[%s5 + $0x24] sm:$0xf]
      %v353 = vld [vmem:[%s5 + $0x28] sm:$0xf]
      %v354 = vld [vmem:[%s5 + $0x2c] sm:$0xf]
      %v355 = vld [vmem:[%s5 + $0x30] sm:$0xf]
      %v356 = vld [vmem:[%s5 + $0x34] sm:$0xf]
      %v357 = vld [vmem:[%s5 + $0x38] sm:$0xf]
      %v358 = vld [vmem:[%s5 + $0x3c] sm:$0xf]
      %v375 = vunpack.c.l.b16 %v327
      %v376 = vunpack.c.l.b16 %v328
      %v377 = vunpack.c.l.b16 %v329
      %v378 = vunpack.c.l.b16 %v330
      %v379 = vunpack.c.l.b16 %v331
      %v380 = vunpack.c.l.b16 %v332
      %v381 = vunpack.c.l.b16 %v333
      %v382 = vunpack.c.l.b16 %v334
      %v383 = vunpack.c.l.b16 %v335
      %v384 = vunpack.c.l.b16 %v336
      %v385 = vunpack.c.l.b16 %v337
      %v386 = vunpack.c.l.b16 %v338
      %v387 = vunpack.c.l.b16 %v339
      %v388 = vunpack.c.l.b16 %v340
      %v389 = vunpack.c.l.b16 %v341
      %v390 = vunpack.c.l.b16 %v342
      %v391 = vpack.c.b16 %v376, %v375
      %v392 = vpack.c.b16 %v378, %v377
      %v393 = vpack.c.b16 %v380, %v379
      %v394 = vpack.c.b16 %v382, %v381
      %v395 = vpack.c.b16 %v384, %v383
      %v396 = vpack.c.b16 %v386, %v385
      %v397 = vpack.c.b16 %v388, %v387
      %v398 = vpack.c.b16 %v390, %v389
      %v423 = vunpack.c.l.b16 %v343
      %v424 = vunpack.c.l.b16 %v344
      %v425 = vunpack.c.l.b16 %v345
      %v426 = vunpack.c.l.b16 %v346
      %v427 = vunpack.c.l.b16 %v347
      %v428 = vunpack.c.l.b16 %v348
      %v429 = vunpack.c.l.b16 %v349
      %v430 = vunpack.c.l.b16 %v350
      %v431 = vunpack.c.l.b16 %v351
      %v432 = vunpack.c.l.b16 %v352
      %v433 = vunpack.c.l.b16 %v353
      %v434 = vunpack.c.l.b16 %v354
      %v435 = vunpack.c.l.b16 %v355
      %v436 = vunpack.c.l.b16 %v356
      %v437 = vunpack.c.l.b16 %v357
      %v438 = vunpack.c.l.b16 %v358
      %v439 = vpack.c.b16 %v424, %v423
      %v440 = vpack.c.b16 %v426, %v425
      %v441 = vpack.c.b16 %v428, %v427
      %v442 = vpack.c.b16 %v430, %v429
      %v443 = vpack.c.b16 %v432, %v431
      %v444 = vpack.c.b16 %v434, %v433
      %v445 = vpack.c.b16 %v436, %v435
      %v446 = vpack.c.b16 %v438, %v437
      %455 = vmatprep.subr.bf16.mxu0 0
      %456 = vmatpush1.bf16.msra.mxu0 %v439
      %457 = vmatprep.subr.bf16.mxu0 0
      %458 = vmatpush1.bf16.msra.mxu0 %v440
      %459 = vmatprep.subr.bf16.mxu0 0
      %460 = vmatpush1.bf16.msra.mxu0 %v441
      %461 = vmatprep.subr.bf16.mxu0 0
      %462 = vmatpush1.bf16.msra.mxu0 %v442
      %463 = vmatprep.subr.bf16.mxu0 0
      %464 = vmatpush1.bf16.msra.mxu0 %v443
      %465 = vmatprep.subr.bf16.mxu0 0
      %466 = vmatpush1.bf16.msra.mxu0 %v444
      %467 = vmatprep.subr.bf16.mxu0 0
      %468 = vmatpush1.bf16.msra.mxu0 %v445
      %469 = vmatprep.subr.bf16.mxu0 0
      %470 = vmatpush1.bf16.msra.mxu0 %v446
      %471 = vmatprep.subr.bf16.mxu0 0
      %472 = vmatpush1.bf16.msra.mxu0 0
      %473 = vmatprep.subr.bf16.mxu0 0
      %474 = vmatpush1.bf16.msra.mxu0 0
      %475 = vmatprep.subr.bf16.mxu0 0
      %476 = vmatpush1.bf16.msra.mxu0 0
      %477 = vmatprep.subr.bf16.mxu0 0
      %478 = vmatpush1.bf16.msra.mxu0 0
      %479 = vmatprep.subr.bf16.mxu0 0
      %480 = vmatpush1.bf16.msra.mxu0 0
      %481 = vmatprep.subr.bf16.mxu0 0
      %482 = vmatpush1.bf16.msra.mxu0 0
      %483 = vmatprep.subr.bf16.mxu0 0
      %484 = vmatpush1.bf16.msra.mxu0 0
      %485 = vmatprep.subr.bf16.mxu0 0
      %486 = vmatpush1.bf16.msra.mxu0 0
      %487 = vmatprep.mubr.bf16.mxu0 0
      %488 = vmatmul.mubr.bf16.gmra.mrb[0].mxu0 %v391
      %v489 = vpop.f32.mrb[0].mxu0
      %v490 = vadd.f32 0.0, %v489
      %v491 = vpop.f32.mrb[0].mxu0
      %v492 = vpop.f32.mrb[0].mxu0
      %v493 = vadd.f32 0.0, %v492
      %v494 = vpop.f32.mrb[0].mxu0
      %495 = vmatprep.mubr.bf16.mxu0 0
      %496 = vmatmul.mubr.bf16.gmra.mrb[0].mxu0 %v392
      %v497 = vpop.f32.mrb[0].mxu0
      %v498 = vadd.f32 0.0, %v497
      %v499 = vpop.f32.mrb[0].mxu0
      %v500 = vpop.f32.mrb[0].mxu0
      %v501 = vadd.f32 0.0, %v500
      %v502 = vpop.f32.mrb[0].mxu0
      %503 = vmatprep.mubr.bf16.mxu0 0
      %504 = vmatmul.mubr.bf16.gmra.mrb[0].mxu0 %v393
      %v505 = vpop.f32.mrb[0].mxu0
      %v506 = vadd.f32 0.0, %v505
      %v507 = vpop.f32.mrb[0].mxu0
      %v508 = vpop.f32.mrb[0].mxu0
      %v509 = vadd.f32 0.0, %v508
      %v510 = vpop.f32.mrb[0].mxu0
      %511 = vmatprep.mubr.bf16.mxu0 0
      %512 = vmatmul.mubr.bf16.gmra.mrb[0].mxu0 %v394
      %v513 = vpop.f32.mrb[0].mxu0
      %v514 = vadd.f32 0.0, %v513
      %v515 = vpop.f32.mrb[0].mxu0
      %v516 = vpop.f32.mrb[0].mxu0
      %v517 = vadd.f32 0.0, %v516
      %v518 = vpop.f32.mrb[0].mxu0
      %519 = vmatprep.mubr.bf16.mxu0 0
      %520 = vmatmul.mubr.bf16.gmra.mrb[0].mxu0 %v395
      %v521 = vpop.f32.mrb[0].mxu0
      %v522 = vadd.f32 0.0, %v521
      %v523 = vpop.f32.mrb[0].mxu0
      %v524 = vpop.f32.mrb[0].mxu0
      %v525 = vadd.f32 0.0, %v524
      %v526 = vpop.f32.mrb[0].mxu0
      %527 = vmatprep.mubr.bf16.mxu0 0
      %528 = vmatmul.mubr.bf16.gmra.mrb[0].mxu0 %v396
      %v529 = vpop.f32.mrb[0].mxu0
      %v530 = vadd.f32 0.0, %v529
      %v531 = vpop.f32.mrb[0].mxu0
      %v532 = vpop.f32.mrb[0].mxu0
      %v533 = vadd.f32 0.0, %v532
      %v534 = vpop.f32.mrb[0].mxu0
      %535 = vmatprep.mubr.bf16.mxu0 0
      %536 = vmatmul.mubr.bf16.gmra.mrb[0].mxu0 %v397
      %v537 = vpop.f32.mrb[0].mxu0
      %v538 = vadd.f32 0.0, %v537
      %v539 = vpop.f32.mrb[0].mxu0
      %v540 = vpop.f32.mrb[0].mxu0
      %v541 = vadd.f32 0.0, %v540
      %v542 = vpop.f32.mrb[0].mxu0
      %543 = vmatprep.mubr.bf16.mxu0 0
      %544 = vmatmul.mubr.bf16.gmra.mrb[0].mxu0 %v398
      %v545 = vpop.f32.mrb[0].mxu0
      %v546 = vadd.f32 0.0, %v545
      %v547 = vpop.f32.mrb[0].mxu0
      %v548 = vpop.f32.mrb[0].mxu0
      %v549 = vadd.f32 0.0, %v548
      %v550 = vpop.f32.mrb[0].mxu0
      %551 = vdwg.mxu0
      %v552 = vld [vmem:[%s6] sm:$0x1]
      %v554 = vlaneseq
      %v555 = vshrl.u32 %v554, 7
      %v556 = vsub.s32 0, %v555
      %v557 = vrot.slane %v552, %v556
      %v559 = vmul.f32 %v490, %v557
      %v560 = vmul.f32 %v493, %v557
      %v561 = vmul.f32 %v498, %v557
      %v562 = vmul.f32 %v501, %v557
      %v563 = vmul.f32 %v506, %v557
      %v564 = vmul.f32 %v509, %v557
      %v565 = vmul.f32 %v514, %v557
      %v566 = vmul.f32 %v517, %v557
      %v567 = vmul.f32 %v522, %v557
      %v568 = vmul.f32 %v525, %v557
      %v569 = vmul.f32 %v530, %v557
      %v570 = vmul.f32 %v533, %v557
      %v571 = vmul.f32 %v538, %v557
      %v572 = vmul.f32 %v541, %v557
      %v573 = vmul.f32 %v546, %v557
      %v574 = vmul.f32 %v549, %v557
      %v575 = vld [vmem:[%s7] sm:$0x1]
      %v577 = vlaneseq
      %v578 = vshrl.u32 %v577, 7
      %v579 = vsub.s32 0, %v578
      %v580 = vrot.slane %v575, %v579
      %v582 = vadd.f32 %v559, %v580
      %v583 = vadd.f32 %v560, %v580
      %v584 = vadd.f32 %v561, %v580
      %v585 = vadd.f32 %v562, %v580
      %v586 = vadd.f32 %v563, %v580
      %v587 = vadd.f32 %v564, %v580
      %v588 = vadd.f32 %v565, %v580
      %v589 = vadd.f32 %v566, %v580
      %v590 = vadd.f32 %v567, %v580
      %v591 = vadd.f32 %v568, %v580
      %v592 = vadd.f32 %v569, %v580
      %v593 = vadd.f32 %v570, %v580
      %v594 = vadd.f32 %v571, %v580
      %v595 = vadd.f32 %v572, %v580
      %v596 = vadd.f32 %v573, %v580
      %v597 = vadd.f32 %v574, %v580
      %v598 = vld [vmem:[#allocation2] sm:$0xff]
      %v599 = vld [vmem:[#allocation2 + $0x8] sm:$0xff]
      %v600 = vld [vmem:[#allocation2 + $0x10] sm:$0xff]
      %v601 = vld [vmem:[#allocation2 + $0x18] sm:$0xff]
      %v602 = vld [vmem:[#allocation2 + $0x20] sm:$0xff]
      %v603 = vld [vmem:[#allocation2 + $0x28] sm:$0xff]
      %v604 = vld [vmem:[#allocation2 + $0x30] sm:$0xff]
      %v605 = vld [vmem:[#allocation2 + $0x38] sm:$0xff]
      %v606 = vld [vmem:[#allocation2 + $0x40] sm:$0xff]
      %v607 = vld [vmem:[#allocation2 + $0x48] sm:$0xff]
      %v608 = vld [vmem:[#allocation2 + $0x50] sm:$0xff]
      %v609 = vld [vmem:[#allocation2 + $0x58] sm:$0xff]
      %v610 = vld [vmem:[#allocation2 + $0x60] sm:$0xff]
      %v611 = vld [vmem:[#allocation2 + $0x68] sm:$0xff]
      %v612 = vld [vmem:[#allocation2 + $0x70] sm:$0xff]
      %v613 = vld [vmem:[#allocation2 + $0x78] sm:$0xff]
      %v614 = vld [vmem:[%s2] sm:$0x1]
      %v616 = vlaneseq
      %v617 = vshrl.u32 %v616, 7
      %v618 = vsub.s32 0, %v617
      %v619 = vrot.slane %v614, %v618
      %v621 = vmul.f32 %v598, %v619
      %v622 = vmul.f32 %v599, %v619
      %v623 = vmul.f32 %v600, %v619
      %v624 = vmul.f32 %v601, %v619
      %v625 = vmul.f32 %v602, %v619
      %v626 = vmul.f32 %v603, %v619
      %v627 = vmul.f32 %v604, %v619
      %v628 = vmul.f32 %v605, %v619
      %v629 = vmul.f32 %v606, %v619
      %v630 = vmul.f32 %v607, %v619
      %v631 = vmul.f32 %v608, %v619
      %v632 = vmul.f32 %v609, %v619
      %v633 = vmul.f32 %v610, %v619
      %v634 = vmul.f32 %v611, %v619
      %v635 = vmul.f32 %v612, %v619
      %v636 = vmul.f32 %v613, %v619
      %v637 = vld [vmem:[%s3] sm:$0x1]
      %v639 = vlaneseq
      %v640 = vshrl.u32 %v639, 7
      %v641 = vsub.s32 0, %v640
      %v642 = vrot.slane %v637, %v641
      %v644 = vadd.f32 %v621, %v642
      %v645 = vadd.f32 %v622, %v642
      %v646 = vadd.f32 %v623, %v642
      %v647 = vadd.f32 %v624, %v642
      %v648 = vadd.f32 %v625, %v642
      %v649 = vadd.f32 %v626, %v642
      %v650 = vadd.f32 %v627, %v642
      %v651 = vadd.f32 %v628, %v642
      %v652 = vadd.f32 %v629, %v642
      %v653 = vadd.f32 %v630, %v642
      %v654 = vadd.f32 %v631, %v642
      %v655 = vadd.f32 %v632, %v642
      %v656 = vadd.f32 %v633, %v642
      %v657 = vadd.f32 %v634, %v642
      %v658 = vadd.f32 %v635, %v642
      %v659 = vadd.f32 %v636, %v642
      %v660 = vadd.f32 %v644, %v582
      %v661 = vadd.f32 %v645, %v583
      %v662 = vadd.f32 %v646, %v584
      %v663 = vadd.f32 %v647, %v585
      %v664 = vadd.f32 %v648, %v586
      %v665 = vadd.f32 %v649, %v587
      %v666 = vadd.f32 %v650, %v588
      %v667 = vadd.f32 %v651, %v589
      %v668 = vadd.f32 %v652, %v590
      %v669 = vadd.f32 %v653, %v591
      %v670 = vadd.f32 %v654, %v592
      %v671 = vadd.f32 %v655, %v593
      %v672 = vadd.f32 %v656, %v594
      %v673 = vadd.f32 %v657, %v595
      %v674 = vadd.f32 %v658, %v596
      %v675 = vadd.f32 %v659, %v597
      %v676 = vmax.f32 %v660, 0.0
      %v677 = vmax.f32 %v661, 0.0
      %v678 = vmax.f32 %v662, 0.0
      %v679 = vmax.f32 %v663, 0.0
      %v680 = vmax.f32 %v664, 0.0
      %v681 = vmax.f32 %v665, 0.0
      %v682 = vmax.f32 %v666, 0.0
      %v683 = vmax.f32 %v667, 0.0
      %v684 = vmax.f32 %v668, 0.0
      %v685 = vmax.f32 %v669, 0.0
      %v686 = vmax.f32 %v670, 0.0
      %v687 = vmax.f32 %v671, 0.0
      %v688 = vmax.f32 %v672, 0.0
      %v689 = vmax.f32 %v673, 0.0
      %v690 = vmax.f32 %v674, 0.0
      %v691 = vmax.f32 %v675, 0.0
      %692 = vst [vmem:[#allocation3] sm:$0xff] %v676
      %693 = vst [vmem:[#allocation3 + $0x8] sm:$0xff] %v677
      %694 = vst [vmem:[#allocation3 + $0x10] sm:$0xff] %v678
      %695 = vst [vmem:[#allocation3 + $0x18] sm:$0xff] %v679
      %696 = vst [vmem:[#allocation3 + $0x20] sm:$0xff] %v680
      %697 = vst [vmem:[#allocation3 + $0x28] sm:$0xff] %v681
      %698 = vst [vmem:[#allocation3 + $0x30] sm:$0xff] %v682
      %699 = vst [vmem:[#allocation3 + $0x38] sm:$0xff] %v683
      %700 = vst [vmem:[#allocation3 + $0x40] sm:$0xff] %v684
      %701 = vst [vmem:[#allocation3 + $0x48] sm:$0xff] %v685
      %702 = vst [vmem:[#allocation3 + $0x50] sm:$0xff] %v686
      %703 = vst [vmem:[#allocation3 + $0x58] sm:$0xff] %v687
      %704 = vst [vmem:[#allocation3 + $0x60] sm:$0xff] %v688
      %705 = vst [vmem:[#allocation3 + $0x68] sm:$0xff] %v689
      %706 = vst [vmem:[#allocation3 + $0x70] sm:$0xff] %v690
      %707 = vst [vmem:[#allocation3 + $0x78] sm:$0xff] %v691
    $region41: #{bottleneck_forward.5} parent=1 // pred_fallthru
      _
    // Predicated region
    $region42: #{bottleneck_forward.5} parent=1 // pred_check
      _
    $region43: #{bottleneck_forward.5} parent=1 // pred_check_branch
      %709 = sbr.rel (0) target = $region45
    $region44: #{bottleneck_forward.5} parent=1 // pred_region
      %s711 = ssub.s32 2048, 2048
      %712 = vsyncadd [#allocation4], %s711
      %s713 = sshll.u32 [#allocation3], 4
      %s714 = int_to_ptr.vmem [resolvable:$true] %s713
      %719 = dma.vmem_to_hbm [thread:$0]  %s714, 2048, %s8, [#allocation4], 128, 128, 8
    $region45: #{bottleneck_forward.5} parent=1 // pred_fallthru
      _
    // Predicated region
    $region46: #{bottleneck_forward.5} parent=1 // pred_check
      _
    $region47: #{bottleneck_forward.5} parent=1 // pred_check_branch
      %721 = sbr.rel (0) target = $region49
    $region48: #{bottleneck_forward.5} parent=1 // pred_region
      %722 = dma.done [#allocation4], 2048
    $region49: #{bottleneck_forward.5} parent=1 // pred_fallthru
      _
    %723 = vsyncpa [#allocation4], 1

</llo_original>
